<compile_context>
chip_gen: v7x
topology: tpu7x:2x2x1
jax: 0.10.0
libtpu: 0.0.40
codegen_flags: <defaults>
</compile_context>

<pallas_src>
import functools

import jax
import jax.numpy as jnp
import numpy as np
from jax.experimental import pallas as pl
from jax.experimental.pallas import tpu as pltpu


def _round_up(n, m):
    return -(-n // m) * m


# ----------------------------------------------------------------------------
# Packed parameter slab layout (rows, 4*H_total lanes), every section starting
# at a multiple-of-8 row so static slices are sublane-tile aligned.
# ----------------------------------------------------------------------------
def _slab_offsets(n_in, h_tot, lanes):
    off, o = {}, 0
    off["wih"] = o;  o += _round_up(n_in, 8)    # (n_in, 4H) block-diag, gate-major
    off["whh"] = o;  o += _round_up(h_tot, 8)   # (H,    4H) block-diag, gate-major
    off["bias"] = o; o += 8                     # (1,    4H) b_ih + b_hh
    off["w1"] = o;   o += _round_up(h_tot, 8)   # (H, lanes) fc1.T, cols>=Hmid zero
    off["b1"] = o;   o += 8                     # (1, lanes)
    off["w2"] = o;   o += lanes                 # (lanes, lanes) fc2.T zero-padded
    off["b2"] = o;   o += 8                     # (1, lanes)
    off["rows"] = o
    return off


# ----------------------------------------------------------------------------
# Fused kernel: merged block-diagonal LSTM recurrence over T steps + MLP head.
# ----------------------------------------------------------------------------
def _lflstm_kernel(x_ref, p_ref, o_ref, *, h_tot):
    # x_ref: (Bt, T, I)     batch tile, batch-major (no wrapper transpose)
    # p_ref: (rows, 4*H)    lane-dense packed parameter slab (one DMA)
    # o_ref: (Bt, 4*H)      lane-dense output slab (fc2 in first `out` lanes)
    bt, t_len, n_in = x_ref.shape
    lanes = p_ref.shape[1]
    ht = h_tot
    off = _slab_offsets(n_in, ht, lanes)
    bf16, f32 = jnp.bfloat16, jnp.float32

    # Static row-offset slices; MXU operands cast to bf16 once (single-pass
    # MXU), accumulation stays f32 via preferred_element_type.
    wih = p_ref[off["wih"]:off["wih"] + n_in, :].astype(bf16)
    whh = p_ref[off["whh"]:off["whh"] + ht, :].astype(bf16)
    bias = p_ref[off["bias"]:off["bias"] + 1, :]
    w1 = p_ref[off["w1"]:off["w1"] + ht, :].astype(bf16)
    b1 = p_ref[off["b1"]:off["b1"] + 1, :]
    w2 = p_ref[off["w2"]:off["w2"] + lanes, :].astype(bf16)
    b2 = p_ref[off["b2"]:off["b2"] + 1, :]

    # Hoisted (non-recurrent) input projection for ALL timesteps in one MXU
    # issue: (Bt*T, I) @ (I, 4H) + bias.  Both reshapes below are
    # layout-trivial for T % 8 == 0 with batch-major rows (row = b*T + t maps
    # to sublane-tile b, sublane t), so no relayout copy is materialized.
    x2 = x_ref[...].reshape(bt * t_len, n_in).astype(bf16)
    pre = jnp.dot(x2, wih, preferred_element_type=f32) + bias
    pre = pre.reshape(bt, t_len, lanes)

    h = jnp.zeros((bt, ht), f32)
    c = jnp.zeros((bt, ht), f32)

    # Fully unrolled recurrence (T small & static).  Gate columns are packed
    # gate-major [ i_a i_b i_c | f.. | g.. | o.. ] so h stays the already
    # concatenated [h_a | h_b | h_c].  On the serial h-chain each step has one
    # (Bt,H)@(H,4H) dot + two full-width EUP pushes; the pre[:, t, :] extract
    # is independent of h and overlaps with the chain.
    for t in range(t_len):
        gates = pre[:, t, :] + jnp.dot(h.astype(bf16), whh,
                                       preferred_element_type=f32)
        sig = jax.nn.sigmoid(gates)          # one full 128-lane EUP push
        tnh = jnp.tanh(gates)                # one full 128-lane EUP push
        i_g = sig[:, 0 * ht:1 * ht]
        f_g = sig[:, 1 * ht:2 * ht]
        o_g = sig[:, 3 * ht:4 * ht]
        g_g = tnh[:, 2 * ht:3 * ht]
        c = f_g * c + i_g * g_g
        h = o_g * jnp.tanh(c)

    # Fused MLP head on the vreg-resident h_cat: fc1 -> relu -> fc2.
    # (w1/b1/w2/b2 are zero-padded to full lane width -> output lanes beyond
    # output_size are exactly zero and the store is a full-width unmasked vst.)
    z = jnp.dot(h.astype(bf16), w1, preferred_element_type=f32) + b1
    z = jnp.maximum(z, 0.0)
    out = jnp.dot(z.astype(bf16), w2, preferred_element_type=f32) + b2
    o_ref[...] = out.astype(o_ref.dtype)


# ----------------------------------------------------------------------------
# Wrapper: 1-D parallel grid over batch tiles.
# ----------------------------------------------------------------------------
def lflstm_forward(param_slab, x, *, hidden_total, output_size, b_tile_max=256):
    """x: (B, T, sum(input_sizes)) f32 -> module's `x.squeeze()` output."""
    B, T, I = x.shape
    lanes = param_slab.shape[1]
    # Batch tile: fill sublanes (multiple of 8), cap at b_tile_max rows so the
    # per-tile VMEM budget stays tiny even on v7x (64 MiB phys / 32 MiB scoped).
    bt = int(min(b_tile_max, _round_up(B, 8)))
    b_pad = _round_up(B, bt)
    if b_pad != B:
        x = jnp.pad(x, ((0, b_pad - B), (0, 0), (0, 0)))

    out = pl.pallas_call(
        functools.partial(_lflstm_kernel, h_tot=hidden_total),
        out_shape=jax.ShapeDtypeStruct((b_pad, lanes), jnp.float32),
        grid=(b_pad // bt,),
        in_specs=[
            pl.BlockSpec((bt, T, I), lambda i: (i, 0, 0)),          # batch tile
            pl.BlockSpec((param_slab.shape[0], lanes), lambda i: (0, 0)),  # slab
        ],
        out_specs=pl.BlockSpec((bt, lanes), lambda i: (i, 0)),
        compiler_params=pltpu.CompilerParams(
            dimension_semantics=("parallel",)),   # both TCs on v7x
    )(x, param_slab)

    # Matches torch `.squeeze()` exactly (removes all size-1 dims).
    return jnp.squeeze(out[:B, :output_size])


# ----------------------------------------------------------------------------
# Host-side packing of PyTorch-layout weights into the lane-dense slab.
# ----------------------------------------------------------------------------
def pack_param_slab(lstm_params, fc1_w, fc1_b, fc2_w, fc2_b,
                    input_sizes, hidden_sizes):
    """lstm_params: list of (w_ih (4H,I), w_hh (4H,H), bias_combined (4H,))."""
    it, ht = sum(input_sizes), sum(hidden_sizes)
    lanes = 4 * ht
    assert lanes % 128 == 0, "4*sum(hidden_sizes) must be a multiple of 128"
    off = _slab_offsets(it, ht, lanes)
    slab = np.zeros((off["rows"], lanes), np.float32)

    i_off = h_off = 0
    for (w_ih, w_hh, b), i_m, h_m in zip(lstm_params, input_sizes, hidden_sizes):
        w_ih, w_hh, b = np.asarray(w_ih), np.asarray(w_hh), np.asarray(b)
        for k in range(4):                       # PyTorch gate order i,f,g,o
            col = k * ht + h_off
            slab[off["wih"] + i_off: off["wih"] + i_off + i_m, col:col + h_m] = \
                w_ih[k * h_m:(k + 1) * h_m, :].T
            slab[off["whh"] + h_off: off["whh"] + h_off + h_m, col:col + h_m] = \
                w_hh[k * h_m:(k + 1) * h_m, :].T
            slab[off["bias"], col:col + h_m] = b[k * h_m:(k + 1) * h_m]
        i_off += i_m
        h_off += h_m

    fc1_w, fc1_b = np.asarray(fc1_w), np.asarray(fc1_b)
    fc2_w, fc2_b = np.asarray(fc2_w), np.asarray(fc2_b)
    hmid, out_sz = fc1_w.shape[0], fc2_w.shape[0]
    slab[off["w1"]:off["w1"] + ht, :hmid] = fc1_w.T
    slab[off["b1"], :hmid] = fc1_b
    slab[off["w2"]:off["w2"] + hmid, :out_sz] = fc2_w.T
    slab[off["b2"], :out_sz] = fc2_b
    return jnp.asarray(slab)


# ----------------------------------------------------------------------------
# Parameter init (PyTorch-style uniform(-1/sqrt(H), 1/sqrt(H)))
# ----------------------------------------------------------------------------
def init_params(key, input_sizes, hidden_sizes, output_size):
    ht = sum(hidden_sizes)
    hmid = ht // 2
    keys = iter(jax.random.split(key, 4 * len(input_sizes) + 4))

    def unif(k, shape, bound):
        return jax.random.uniform(k, shape, jnp.float32, -bound, bound)

    lstm_raw, ref_lstms = [], []
    for isz, hsz in zip(input_sizes, hidden_sizes):
        bound = 1.0 / float(np.sqrt(hsz))
        w_ih = unif(next(keys), (4 * hsz, isz), bound)   # torch (4H, I)
        w_hh = unif(next(keys), (4 * hsz, hsz), bound)   # torch (4H, H)
        b_ih = unif(next(keys), (4 * hsz,), bound)
        b_hh = unif(next(keys), (4 * hsz,), bound)
        lstm_raw.append((w_ih, w_hh, b_ih + b_hh))
        ref_lstms.append(dict(w_ih_t=w_ih.T, w_hh_t=w_hh.T,
                              bias=(b_ih + b_hh)[None, :]))

    bv1 = 1.0 / float(np.sqrt(ht))
    bv2 = 1.0 / float(np.sqrt(hmid))
    fc1_w = unif(next(keys), (hmid, ht), bv1)            # torch (out, in)
    fc1_b = unif(next(keys), (hmid,), bv1)
    fc2_w = unif(next(keys), (output_size, hmid), bv2)
    fc2_b = unif(next(keys), (output_size,), bv2)

    slab = pack_param_slab(lstm_raw, fc1_w, fc1_b, fc2_w, fc2_b,
                           input_sizes, hidden_sizes)
    ref = dict(lstms=ref_lstms, fc1_w_t=fc1_w.T, fc1_b=fc1_b[None, :],
               fc2_w_t=fc2_w.T, fc2_b=fc2_b[None, :])
    return slab, ref


# ----------------------------------------------------------------------------
# Pure-JAX reference (per-modality, un-fused, f32) for correctness check
# ----------------------------------------------------------------------------
def _ref_lstm_last(xs, p):
    B, T, _ = xs.shape
    H = p["w_hh_t"].shape[0]
    h = jnp.zeros((B, H), jnp.float32)
    c = jnp.zeros((B, H), jnp.float32)
    for t in range(T):
        g = xs[:, t, :] @ p["w_ih_t"] + h @ p["w_hh_t"] + p["bias"]
        i = jax.nn.sigmoid(g[:, :H])
        f = jax.nn.sigmoid(g[:, H:2 * H])
        gg = jnp.tanh(g[:, 2 * H:3 * H])
        o = jax.nn.sigmoid(g[:, 3 * H:4 * H])
        c = f * c + i * gg
        h = o * jnp.tanh(c)
    return h


def ref_forward(ref_params, x, input_sizes):
    a, b, c = input_sizes
    hs = [
        _ref_lstm_last(x[:, :, :a], ref_params["lstms"][0]),
        _ref_lstm_last(x[:, :, a:a + b], ref_params["lstms"][1]),
        _ref_lstm_last(x[:, :, -c:], ref_params["lstms"][2]),
    ]
    h = jnp.concatenate(hs, axis=1)
    z = jnp.maximum(h @ ref_params["fc1_w_t"] + ref_params["fc1_b"], 0.0)
    return jnp.squeeze(z @ ref_params["fc2_w_t"] + ref_params["fc2_b"])


if __name__ == "__main__":
    # Small shapes consistent with the module's forward.
    B, T = 2, 8
    input_sizes = [4, 6, 8]      # a, b, c  (sum = 18 features)
    hidden_sizes = [8, 8, 16]    # sum = 32  ->  4*32 = 128-lane gate row
    output_size = 4
    dropout = 0.1                # inference: identity

    key = jax.random.PRNGKey(0)
    kx, kx2, kp = jax.random.split(key, 3)
    slab, ref_params = init_params(kp, input_sizes, hidden_sizes, output_size)

    # --- tiny-batch path (single tile) --------------------------------------
    x = jax.random.normal(kx, (B, T, sum(input_sizes)), jnp.float32)
    out = lflstm_forward(slab, x, hidden_total=sum(hidden_sizes),
                         output_size=output_size)
    out = jax.block_until_ready(out)
    ref = ref_forward(ref_params, x, input_sizes)
    assert out.shape == (B, output_size), out.shape
    # bf16 MXU operands vs f32 reference -> slightly loosened tolerance.
    assert jnp.allclose(out, ref, atol=5e-2, rtol=5e-2), (out, ref)

    # --- batched path: multi-tile parallel grid + ragged batch padding ------
    B2 = 100
    x2 = jax.random.normal(kx2, (B2, T, sum(input_sizes)), jnp.float32)
    out2 = jax.block_until_ready(
        lflstm_forward(slab, x2, hidden_total=sum(hidden_sizes),
                       output_size=output_size, b_tile_max=32))
    ref2 = ref_forward(ref_params, x2, input_sizes)
    assert out2.shape == (B2, output_size), out2.shape
    assert jnp.allclose(out2, ref2, atol=5e-2, rtol=5e-2)

    print("KERNEL_OK")
</pallas_src>

<mosaic_0001>
module attributes {stable_mosaic.version = 11 : i64} {
  func.func @_lflstm_kernel(%arg0: i32, %arg1: memref<8x8x18xf32, #tpu.memory_space<vmem>>, %arg2: memref<240x128xf32, #tpu.memory_space<vmem>>, %arg3: memref<8x128xf32, #tpu.memory_space<vmem>>) attributes {dimension_semantics = [#tpu.dimension_semantics<parallel>], iteration_bounds = array<i64: 1>, scalar_prefetch = 0 : i64, scratch_operands = 0 : i64, tpu.core_type = #tpu.core_type<tc>, window_params = [{transform_indices = @transform_0, window_bounds = array<i64: 8, 8, 18>}, {pipeline_mode = #tpu.pipeline_mode<synchronous>, transform_indices = @transform_1, window_bounds = array<i64: 240, 128>}, {transform_indices = @transform_2, window_bounds = array<i64: 8, 128>}]} {
    %c0 = arith.constant 0 : index
    %c0_0 = arith.constant 0 : index
    %0 = vector.load %arg2[%c0, %c0_0] : memref<240x128xf32, #tpu.memory_space<vmem>>, vector<18x128xf32>
    %1 = arith.truncf %0 : vector<18x128xf32> to vector<18x128xbf16>
    %c24 = arith.constant 24 : index
    %c0_1 = arith.constant 0 : index
    %2 = vector.load %arg2[%c24, %c0_1] : memref<240x128xf32, #tpu.memory_space<vmem>>, vector<32x128xf32>
    %3 = arith.truncf %2 : vector<32x128xf32> to vector<32x128xbf16>
    %c56 = arith.constant 56 : index
    %c0_2 = arith.constant 0 : index
    %4 = vector.load %arg2[%c56, %c0_2] : memref<240x128xf32, #tpu.memory_space<vmem>>, vector<1x128xf32>
    %c64 = arith.constant 64 : index
    %c0_3 = arith.constant 0 : index
    %5 = vector.load %arg2[%c64, %c0_3] : memref<240x128xf32, #tpu.memory_space<vmem>>, vector<32x128xf32>
    %6 = arith.truncf %5 : vector<32x128xf32> to vector<32x128xbf16>
    %c96 = arith.constant 96 : index
    %c0_4 = arith.constant 0 : index
    %7 = vector.load %arg2[%c96, %c0_4] : memref<240x128xf32, #tpu.memory_space<vmem>>, vector<1x128xf32>
    %c104 = arith.constant 104 : index
    %c0_5 = arith.constant 0 : index
    %8 = vector.load %arg2[%c104, %c0_5] : memref<240x128xf32, #tpu.memory_space<vmem>>, vector<128x128xf32>
    %9 = arith.truncf %8 : vector<128x128xf32> to vector<128x128xbf16>
    %c232 = arith.constant 232 : index
    %c0_6 = arith.constant 0 : index
    %10 = vector.load %arg2[%c232, %c0_6] : memref<240x128xf32, #tpu.memory_space<vmem>>, vector<1x128xf32>
    %c0_7 = arith.constant 0 : index
    %c0_8 = arith.constant 0 : index
    %c0_9 = arith.constant 0 : index
    %11 = vector.load %arg1[%c0_7, %c0_8, %c0_9] : memref<8x8x18xf32, #tpu.memory_space<vmem>>, vector<8x8x18xf32>
    %12 = vector.shape_cast %11 : vector<8x8x18xf32> to vector<64x18xf32>
    %13 = arith.truncf %12 : vector<64x18xf32> to vector<64x18xbf16>
    %cst = arith.constant dense<0.000000e+00> : vector<64x128xf32>
    %14 = tpu.matmul %13, %1, %cst {dimension_numbers = #tpu.dot_dimension_numbers<[1], [0], [0], [1], [0, 0, 1, 1], [], []>} : vector<64x18xbf16>, vector<18x128xbf16>, vector<64x128xf32> -> vector<64x128xf32>
    %15 = vector.broadcast %4 : vector<1x128xf32> to vector<64x128xf32>
    %16 = arith.addf %14, %15 : vector<64x128xf32>
    %17 = vector.shape_cast %16 : vector<64x128xf32> to vector<8x8x128xf32>
    %cst_10 = arith.constant 0.000000e+00 : f32
    %18 = vector.broadcast %cst_10 : f32 to vector<8x32xf32>
    %cst_11 = arith.constant 0.000000e+00 : f32
    %19 = vector.broadcast %cst_11 : f32 to vector<8x32xf32>
    %20 = vector.extract_strided_slice %17 {offsets = [0, 0, 0], sizes = [8, 1, 128], strides = [1, 1, 1]} : vector<8x8x128xf32> to vector<8x1x128xf32>
    %21 = vector.shape_cast %20 : vector<8x1x128xf32> to vector<8x128xf32>
    %22 = arith.truncf %18 : vector<8x32xf32> to vector<8x32xbf16>
    %cst_12 = arith.constant dense<0.000000e+00> : vector<8x128xf32>
    %23 = tpu.matmul %22, %3, %cst_12 {dimension_numbers = #tpu.dot_dimension_numbers<[1], [0], [0], [1], [0, 0, 1, 1], [], []>} : vector<8x32xbf16>, vector<32x128xbf16>, vector<8x128xf32> -> vector<8x128xf32>
    %24 = arith.addf %21, %23 : vector<8x128xf32>
    %25 = arith.negf %24 : vector<8x128xf32>
    %26 = math.exp %25 : vector<8x128xf32>
    %cst_13 = arith.constant 1.000000e+00 : f32
    %27 = vector.broadcast %cst_13 : f32 to vector<8x128xf32>
    %28 = arith.addf %27, %26 : vector<8x128xf32>
    %29 = arith.divf %27, %28 : vector<8x128xf32>
    %30 = math.tanh %24 : vector<8x128xf32>
    %31 = vector.extract_strided_slice %29 {offsets = [0, 0], sizes = [8, 32], strides = [1, 1]} : vector<8x128xf32> to vector<8x32xf32>
    %32 = vector.extract_strided_slice %29 {offsets = [0, 32], sizes = [8, 32], strides = [1, 1]} : vector<8x128xf32> to vector<8x32xf32>
    %33 = vector.extract_strided_slice %29 {offsets = [0, 96], sizes = [8, 32], strides = [1, 1]} : vector<8x128xf32> to vector<8x32xf32>
    %34 = vector.extract_strided_slice %30 {offsets = [0, 64], sizes = [8, 32], strides = [1, 1]} : vector<8x128xf32> to vector<8x32xf32>
    %35 = arith.mulf %32, %19 : vector<8x32xf32>
    %36 = arith.mulf %31, %34 : vector<8x32xf32>
    %37 = arith.addf %35, %36 : vector<8x32xf32>
    %38 = math.tanh %37 : vector<8x32xf32>
    %39 = arith.mulf %33, %38 : vector<8x32xf32>
    %40 = vector.extract_strided_slice %17 {offsets = [0, 1, 0], sizes = [8, 1, 128], strides = [1, 1, 1]} : vector<8x8x128xf32> to vector<8x1x128xf32>
    %41 = vector.shape_cast %40 : vector<8x1x128xf32> to vector<8x128xf32>
    %42 = arith.truncf %39 : vector<8x32xf32> to vector<8x32xbf16>
    %cst_14 = arith.constant dense<0.000000e+00> : vector<8x128xf32>
    %43 = tpu.matmul %42, %3, %cst_14 {dimension_numbers = #tpu.dot_dimension_numbers<[1], [0], [0], [1], [0, 0, 1, 1], [], []>} : vector<8x32xbf16>, vector<32x128xbf16>, vector<8x128xf32> -> vector<8x128xf32>
    %44 = arith.addf %41, %43 : vector<8x128xf32>
    %45 = arith.negf %44 : vector<8x128xf32>
    %46 = math.exp %45 : vector<8x128xf32>
    %cst_15 = arith.constant 1.000000e+00 : f32
    %47 = vector.broadcast %cst_15 : f32 to vector<8x128xf32>
    %48 = arith.addf %47, %46 : vector<8x128xf32>
    %49 = arith.divf %47, %48 : vector<8x128xf32>
    %50 = math.tanh %44 : vector<8x128xf32>
    %51 = vector.extract_strided_slice %49 {offsets = [0, 0], sizes = [8, 32], strides = [1, 1]} : vector<8x128xf32> to vector<8x32xf32>
    %52 = vector.extract_strided_slice %49 {offsets = [0, 32], sizes = [8, 32], strides = [1, 1]} : vector<8x128xf32> to vector<8x32xf32>
    %53 = vector.extract_strided_slice %49 {offsets = [0, 96], sizes = [8, 32], strides = [1, 1]} : vector<8x128xf32> to vector<8x32xf32>
    %54 = vector.extract_strided_slice %50 {offsets = [0, 64], sizes = [8, 32], strides = [1, 1]} : vector<8x128xf32> to vector<8x32xf32>
    %55 = arith.mulf %52, %37 : vector<8x32xf32>
    %56 = arith.mulf %51, %54 : vector<8x32xf32>
    %57 = arith.addf %55, %56 : vector<8x32xf32>
    %58 = math.tanh %57 : vector<8x32xf32>
    %59 = arith.mulf %53, %58 : vector<8x32xf32>
    %60 = vector.extract_strided_slice %17 {offsets = [0, 2, 0], sizes = [8, 1, 128], strides = [1, 1, 1]} : vector<8x8x128xf32> to vector<8x1x128xf32>
    %61 = vector.shape_cast %60 : vector<8x1x128xf32> to vector<8x128xf32>
    %62 = arith.truncf %59 : vector<8x32xf32> to vector<8x32xbf16>
    %cst_16 = arith.constant dense<0.000000e+00> : vector<8x128xf32>
    %63 = tpu.matmul %62, %3, %cst_16 {dimension_numbers = #tpu.dot_dimension_numbers<[1], [0], [0], [1], [0, 0, 1, 1], [], []>} : vector<8x32xbf16>, vector<32x128xbf16>, vector<8x128xf32> -> vector<8x128xf32>
    %64 = arith.addf %61, %63 : vector<8x128xf32>
    %65 = arith.negf %64 : vector<8x128xf32>
    %66 = math.exp %65 : vector<8x128xf32>
    %cst_17 = arith.constant 1.000000e+00 : f32
    %67 = vector.broadcast %cst_17 : f32 to vector<8x128xf32>
    %68 = arith.addf %67, %66 : vector<8x128xf32>
    %69 = arith.divf %67, %68 : vector<8x128xf32>
    %70 = math.tanh %64 : vector<8x128xf32>
    %71 = vector.extract_strided_slice %69 {offsets = [0, 0], sizes = [8, 32], strides = [1, 1]} : vector<8x128xf32> to vector<8x32xf32>
    %72 = vector.extract_strided_slice %69 {offsets = [0, 32], sizes = [8, 32], strides = [1, 1]} : vector<8x128xf32> to vector<8x32xf32>
    %73 = vector.extract_strided_slice %69 {offsets = [0, 96], sizes = [8, 32], strides = [1, 1]} : vector<8x128xf32> to vector<8x32xf32>
    %74 = vector.extract_strided_slice %70 {offsets = [0, 64], sizes = [8, 32], strides = [1, 1]} : vector<8x128xf32> to vector<8x32xf32>
    %75 = arith.mulf %72, %57 : vector<8x32xf32>
    %76 = arith.mulf %71, %74 : vector<8x32xf32>
    %77 = arith.addf %75, %76 : vector<8x32xf32>
    %78 = math.tanh %77 : vector<8x32xf32>
    %79 = arith.mulf %73, %78 : vector<8x32xf32>
    %80 = vector.extract_strided_slice %17 {offsets = [0, 3, 0], sizes = [8, 1, 128], strides = [1, 1, 1]} : vector<8x8x128xf32> to vector<8x1x128xf32>
    %81 = vector.shape_cast %80 : vector<8x1x128xf32> to vector<8x128xf32>
    %82 = arith.truncf %79 : vector<8x32xf32> to vector<8x32xbf16>
    %cst_18 = arith.constant dense<0.000000e+00> : vector<8x128xf32>
    %83 = tpu.matmul %82, %3, %cst_18 {dimension_numbers = #tpu.dot_dimension_numbers<[1], [0], [0], [1], [0, 0, 1, 1], [], []>} : vector<8x32xbf16>, vector<32x128xbf16>, vector<8x128xf32> -> vector<8x128xf32>
    %84 = arith.addf %81, %83 : vector<8x128xf32>
    %85 = arith.negf %84 : vector<8x128xf32>
    %86 = math.exp %85 : vector<8x128xf32>
    %cst_19 = arith.constant 1.000000e+00 : f32
    %87 = vector.broadcast %cst_19 : f32 to vector<8x128xf32>
    %88 = arith.addf %87, %86 : vector<8x128xf32>
    %89 = arith.divf %87, %88 : vector<8x128xf32>
    %90 = math.tanh %84 : vector<8x128xf32>
    %91 = vector.extract_strided_slice %89 {offsets = [0, 0], sizes = [8, 32], strides = [1, 1]} : vector<8x128xf32> to vector<8x32xf32>
    %92 = vector.extract_strided_slice %89 {offsets = [0, 32], sizes = [8, 32], strides = [1, 1]} : vector<8x128xf32> to vector<8x32xf32>
    %93 = vector.extract_strided_slice %89 {offsets = [0, 96], sizes = [8, 32], strides = [1, 1]} : vector<8x128xf32> to vector<8x32xf32>
    %94 = vector.extract_strided_slice %90 {offsets = [0, 64], sizes = [8, 32], strides = [1, 1]} : vector<8x128xf32> to vector<8x32xf32>
    %95 = arith.mulf %92, %77 : vector<8x32xf32>
    %96 = arith.mulf %91, %94 : vector<8x32xf32>
    %97 = arith.addf %95, %96 : vector<8x32xf32>
    %98 = math.tanh %97 : vector<8x32xf32>
    %99 = arith.mulf %93, %98 : vector<8x32xf32>
    %100 = vector.extract_strided_slice %17 {offsets = [0, 4, 0], sizes = [8, 1, 128], strides = [1, 1, 1]} : vector<8x8x128xf32> to vector<8x1x128xf32>
    %101 = vector.shape_cast %100 : vector<8x1x128xf32> to vector<8x128xf32>
    %102 = arith.truncf %99 : vector<8x32xf32> to vector<8x32xbf16>
    %cst_20 = arith.constant dense<0.000000e+00> : vector<8x128xf32>
    %103 = tpu.matmul %102, %3, %cst_20 {dimension_numbers = #tpu.dot_dimension_numbers<[1], [0], [0], [1], [0, 0, 1, 1], [], []>} : vector<8x32xbf16>, vector<32x128xbf16>, vector<8x128xf32> -> vector<8x128xf32>
    %104 = arith.addf %101, %103 : vector<8x128xf32>
    %105 = arith.negf %104 : vector<8x128xf32>
    %106 = math.exp %105 : vector<8x128xf32>
    %cst_21 = arith.constant 1.000000e+00 : f32
    %107 = vector.broadcast %cst_21 : f32 to vector<8x128xf32>
    %108 = arith.addf %107, %106 : vector<8x128xf32>
    %109 = arith.divf %107, %108 : vector<8x128xf32>
    %110 = math.tanh %104 : vector<8x128xf32>
    %111 = vector.extract_strided_slice %109 {offsets = [0, 0], sizes = [8, 32], strides = [1, 1]} : vector<8x128xf32> to vector<8x32xf32>
    %112 = vector.extract_strided_slice %109 {offsets = [0, 32], sizes = [8, 32], strides = [1, 1]} : vector<8x128xf32> to vector<8x32xf32>
    %113 = vector.extract_strided_slice %109 {offsets = [0, 96], sizes = [8, 32], strides = [1, 1]} : vector<8x128xf32> to vector<8x32xf32>
    %114 = vector.extract_strided_slice %110 {offsets = [0, 64], sizes = [8, 32], strides = [1, 1]} : vector<8x128xf32> to vector<8x32xf32>
    %115 = arith.mulf %112, %97 : vector<8x32xf32>
    %116 = arith.mulf %111, %114 : vector<8x32xf32>
    %117 = arith.addf %115, %116 : vector<8x32xf32>
    %118 = math.tanh %117 : vector<8x32xf32>
    %119 = arith.mulf %113, %118 : vector<8x32xf32>
    %120 = vector.extract_strided_slice %17 {offsets = [0, 5, 0], sizes = [8, 1, 128], strides = [1, 1, 1]} : vector<8x8x128xf32> to vector<8x1x128xf32>
    %121 = vector.shape_cast %120 : vector<8x1x128xf32> to vector<8x128xf32>
    %122 = arith.truncf %119 : vector<8x32xf32> to vector<8x32xbf16>
    %cst_22 = arith.constant dense<0.000000e+00> : vector<8x128xf32>
    %123 = tpu.matmul %122, %3, %cst_22 {dimension_numbers = #tpu.dot_dimension_numbers<[1], [0], [0], [1], [0, 0, 1, 1], [], []>} : vector<8x32xbf16>, vector<32x128xbf16>, vector<8x128xf32> -> vector<8x128xf32>
    %124 = arith.addf %121, %123 : vector<8x128xf32>
    %125 = arith.negf %124 : vector<8x128xf32>
    %126 = math.exp %125 : vector<8x128xf32>
    %cst_23 = arith.constant 1.000000e+00 : f32
    %127 = vector.broadcast %cst_23 : f32 to vector<8x128xf32>
    %128 = arith.addf %127, %126 : vector<8x128xf32>
    %129 = arith.divf %127, %128 : vector<8x128xf32>
    %130 = math.tanh %124 : vector<8x128xf32>
    %131 = vector.extract_strided_slice %129 {offsets = [0, 0], sizes = [8, 32], strides = [1, 1]} : vector<8x128xf32> to vector<8x32xf32>
    %132 = vector.extract_strided_slice %129 {offsets = [0, 32], sizes = [8, 32], strides = [1, 1]} : vector<8x128xf32> to vector<8x32xf32>
    %133 = vector.extract_strided_slice %129 {offsets = [0, 96], sizes = [8, 32], strides = [1, 1]} : vector<8x128xf32> to vector<8x32xf32>
    %134 = vector.extract_strided_slice %130 {offsets = [0, 64], sizes = [8, 32], strides = [1, 1]} : vector<8x128xf32> to vector<8x32xf32>
    %135 = arith.mulf %132, %117 : vector<8x32xf32>
    %136 = arith.mulf %131, %134 : vector<8x32xf32>
    %137 = arith.addf %135, %136 : vector<8x32xf32>
    %138 = math.tanh %137 : vector<8x32xf32>
    %139 = arith.mulf %133, %138 : vector<8x32xf32>
    %140 = vector.extract_strided_slice %17 {offsets = [0, 6, 0], sizes = [8, 1, 128], strides = [1, 1, 1]} : vector<8x8x128xf32> to vector<8x1x128xf32>
    %141 = vector.shape_cast %140 : vector<8x1x128xf32> to vector<8x128xf32>
    %142 = arith.truncf %139 : vector<8x32xf32> to vector<8x32xbf16>
    %cst_24 = arith.constant dense<0.000000e+00> : vector<8x128xf32>
    %143 = tpu.matmul %142, %3, %cst_24 {dimension_numbers = #tpu.dot_dimension_numbers<[1], [0], [0], [1], [0, 0, 1, 1], [], []>} : vector<8x32xbf16>, vector<32x128xbf16>, vector<8x128xf32> -> vector<8x128xf32>
    %144 = arith.addf %141, %143 : vector<8x128xf32>
    %145 = arith.negf %144 : vector<8x128xf32>
    %146 = math.exp %145 : vector<8x128xf32>
    %cst_25 = arith.constant 1.000000e+00 : f32
    %147 = vector.broadcast %cst_25 : f32 to vector<8x128xf32>
    %148 = arith.addf %147, %146 : vector<8x128xf32>
    %149 = arith.divf %147, %148 : vector<8x128xf32>
    %150 = math.tanh %144 : vector<8x128xf32>
    %151 = vector.extract_strided_slice %149 {offsets = [0, 0], sizes = [8, 32], strides = [1, 1]} : vector<8x128xf32> to vector<8x32xf32>
    %152 = vector.extract_strided_slice %149 {offsets = [0, 32], sizes = [8, 32], strides = [1, 1]} : vector<8x128xf32> to vector<8x32xf32>
    %153 = vector.extract_strided_slice %149 {offsets = [0, 96], sizes = [8, 32], strides = [1, 1]} : vector<8x128xf32> to vector<8x32xf32>
    %154 = vector.extract_strided_slice %150 {offsets = [0, 64], sizes = [8, 32], strides = [1, 1]} : vector<8x128xf32> to vector<8x32xf32>
    %155 = arith.mulf %152, %137 : vector<8x32xf32>
    %156 = arith.mulf %151, %154 : vector<8x32xf32>
    %157 = arith.addf %155, %156 : vector<8x32xf32>
    %158 = math.tanh %157 : vector<8x32xf32>
    %159 = arith.mulf %153, %158 : vector<8x32xf32>
    %160 = vector.extract_strided_slice %17 {offsets = [0, 7, 0], sizes = [8, 1, 128], strides = [1, 1, 1]} : vector<8x8x128xf32> to vector<8x1x128xf32>
    %161 = vector.shape_cast %160 : vector<8x1x128xf32> to vector<8x128xf32>
    %162 = arith.truncf %159 : vector<8x32xf32> to vector<8x32xbf16>
    %cst_26 = arith.constant dense<0.000000e+00> : vector<8x128xf32>
    %163 = tpu.matmul %162, %3, %cst_26 {dimension_numbers = #tpu.dot_dimension_numbers<[1], [0], [0], [1], [0, 0, 1, 1], [], []>} : vector<8x32xbf16>, vector<32x128xbf16>, vector<8x128xf32> -> vector<8x128xf32>
    %164 = arith.addf %161, %163 : vector<8x128xf32>
    %165 = arith.negf %164 : vector<8x128xf32>
    %166 = math.exp %165 : vector<8x128xf32>
    %cst_27 = arith.constant 1.000000e+00 : f32
    %167 = vector.broadcast %cst_27 : f32 to vector<8x128xf32>
    %168 = arith.addf %167, %166 : vector<8x128xf32>
    %169 = arith.divf %167, %168 : vector<8x128xf32>
    %170 = math.tanh %164 : vector<8x128xf32>
    %171 = vector.extract_strided_slice %169 {offsets = [0, 0], sizes = [8, 32], strides = [1, 1]} : vector<8x128xf32> to vector<8x32xf32>
    %172 = vector.extract_strided_slice %169 {offsets = [0, 32], sizes = [8, 32], strides = [1, 1]} : vector<8x128xf32> to vector<8x32xf32>
    %173 = vector.extract_strided_slice %169 {offsets = [0, 96], sizes = [8, 32], strides = [1, 1]} : vector<8x128xf32> to vector<8x32xf32>
    %174 = vector.extract_strided_slice %170 {offsets = [0, 64], sizes = [8, 32], strides = [1, 1]} : vector<8x128xf32> to vector<8x32xf32>
    %175 = arith.mulf %172, %157 : vector<8x32xf32>
    %176 = arith.mulf %171, %174 : vector<8x32xf32>
    %177 = arith.addf %175, %176 : vector<8x32xf32>
    %178 = math.tanh %177 : vector<8x32xf32>
    %179 = arith.mulf %173, %178 : vector<8x32xf32>
    %180 = arith.truncf %179 : vector<8x32xf32> to vector<8x32xbf16>
    %cst_28 = arith.constant dense<0.000000e+00> : vector<8x128xf32>
    %181 = tpu.matmul %180, %6, %cst_28 {dimension_numbers = #tpu.dot_dimension_numbers<[1], [0], [0], [1], [0, 0, 1, 1], [], []>} : vector<8x32xbf16>, vector<32x128xbf16>, vector<8x128xf32> -> vector<8x128xf32>
    %182 = vector.broadcast %7 : vector<1x128xf32> to vector<8x128xf32>
    %183 = arith.addf %181, %182 : vector<8x128xf32>
    %cst_29 = arith.constant 0.000000e+00 : f32
    %184 = vector.broadcast %cst_29 : f32 to vector<8x128xf32>
    %185 = arith.maximumf %183, %184 : vector<8x128xf32>
    %186 = arith.truncf %185 : vector<8x128xf32> to vector<8x128xbf16>
    %cst_30 = arith.constant dense<0.000000e+00> : vector<8x128xf32>
    %187 = tpu.matmul %186, %9, %cst_30 {dimension_numbers = #tpu.dot_dimension_numbers<[1], [0], [0], [1], [0, 0, 1, 1], [], []>} : vector<8x128xbf16>, vector<128x128xbf16>, vector<8x128xf32> -> vector<8x128xf32>
    %188 = vector.broadcast %10 : vector<1x128xf32> to vector<8x128xf32>
    %189 = arith.addf %187, %188 : vector<8x128xf32>
    %c0_31 = arith.constant 0 : index
    %c0_32 = arith.constant 0 : index
    %190 = vector.load %arg3[%c0_31, %c0_32] : memref<8x128xf32, #tpu.memory_space<vmem>>, vector<8x128xf32>
    tpu.vector_store %arg3[%c0_31, %c0_32], %189 {strides = array<i32>} : memref<8x128xf32, #tpu.memory_space<vmem>>, vector<8x128xf32>,
    return
  }
  func.func @transform_0(%arg0: i32) -> (i32, i32, i32) {
    %c0_i32 = arith.constant 0 : i32
    %c0_i32_0 = arith.constant 0 : i32
    %c0_i32_1 = arith.constant 0 : i32
    return %arg0, %c0_i32, %c0_i32_0 : i32, i32, i32
  }
  func.func @transform_1(%arg0: i32) -> (i32, i32) {
    %c0_i32 = arith.constant 0 : i32
    %c0_i32_0 = arith.constant 0 : i32
    %c0_i32_1 = arith.constant 0 : i32
    return %c0_i32, %c0_i32_0 : i32, i32
  }
  func.func @transform_2(%arg0: i32) -> (i32, i32) {
    %c0_i32 = arith.constant 0 : i32
    %c0_i32_0 = arith.constant 0 : i32
    return %arg0, %c0_i32 : i32, i32
  }
}

</mosaic_0001>

<llo_original>
// kernel: tpu_custom_call.1
$region0: #{tpu_custom_call.1}
  #allocation0 [shape = 'u32[]', space=smem, size = 0x4, offset = 0x4, fixed_abs, tag = 'smem constant byte address 0x4 - core index']
  #allocation1 [shape = 'u32[144,128]{1,0:T(1,128)}', space=vmem, size = 0x12000, scoped, tag = 'internal scratch']
  %s0 = inlined_call_operand.hbm [shape: f32[8,8,18], index: 0, kind: input, shape index: {}]
  %s1 = inlined_call_operand.hbm [shape: f32[240,128], index: 1, kind: input, shape index: {}]
  %s2 = inlined_call_operand.hbm [shape: f32[8,128], index: 2, kind: output, shape index: {}]
  %s3 = sld [smem:[#allocation0]]
  $region26: #{tpu_custom_call.1} parent=0
    _
  %s5 = ssub.s32 1, %s3
  %s6 = scalar_select 0, %s5, %s3
  $region1: #{tpu_custom_call.1} parent=0
    #allocation2 [shape = 'u8[32768]{0}', space=vmem, size = 0x8000, scoped, tag = 'input window, operand 0, single buffered']
    #allocation3 [shape = 's32[1]{0}', space=sflag, size = 0x4, scoped, tag = 'scoped memory for tpu_custom_call.1']
    #allocation4 [shape = 's32[1]{0}', space=sflag, size = 0x4, scoped, tag = 'scoped memory for tpu_custom_call.1']
    #allocation5 [shape = 'u8[122880]{0}', space=vmem, size = 0x1e000, scoped, tag = 'input window, operand 1, single buffered']
    #allocation6 [shape = 's32[1]{0}', space=sflag, size = 0x4, scoped, tag = 'scoped memory for tpu_custom_call.1']
    #allocation7 [shape = 'u8[4096]{0}', space=vmem, size = 0x1000, scoped, tag = 'output window, operand 0, single buffered']
    %7 = vsyncpa [#allocation3], 0
    %8 = vsyncpa [#allocation6], 0
    %9 = vsyncpa [#allocation4], 0
    // Predicated region
    $region2: #{tpu_custom_call.1} parent=1 // pred_check
      _
    $region3: #{tpu_custom_call.1} parent=1 // pred_check_branch
      %11 = sbr.rel (0) target = $region5
    $region4: #{tpu_custom_call.1} parent=1 // pred_region
      %s13 = ssub.s32 1024, 1024
      %14 = vsyncadd [#allocation3], %s13
      %s15 = sshll.u32 [#allocation2], 4
      %s16 = int_to_ptr.vmem [resolvable:$true] %s15
      %21 = dma.hbm_to_vmem [thread:$0]  %s0, 1024, %s16, [#allocation3], 128, 128, 8
    $region5: #{tpu_custom_call.1} parent=1 // pred_fallthru
      _
    // Predicated region
    $region6: #{tpu_custom_call.1} parent=1 // pred_check
      _
    $region7: #{tpu_custom_call.1} parent=1 // pred_check_branch
      %23 = sbr.rel (0) target = $region9
    $region8: #{tpu_custom_call.1} parent=1 // pred_region
      %s25 = ssub.s32 3840, 3840
      %26 = vsyncadd [#allocation6], %s25
      %s27 = sshll.u32 [#allocation5], 4
      %s28 = int_to_ptr.vmem [resolvable:$true] %s27
      %33 = dma.hbm_to_vmem [thread:$0]  %s1, 3840, %s28, [#allocation6], 128, 128, 8
    $region9: #{tpu_custom_call.1} parent=1 // pred_fallthru
      _
    // Predicated region
    $region10: #{tpu_custom_call.1} parent=1 // pred_check
      _
    $region11: #{tpu_custom_call.1} parent=1 // pred_check_branch
      %35 = sbr.rel (0) target = $region13
    $region12: #{tpu_custom_call.1} parent=1 // pred_region
      %36 = dma.done [#allocation3], 1024
    $region13: #{tpu_custom_call.1} parent=1 // pred_fallthru
      _
    // Predicated region
    $region14: #{tpu_custom_call.1} parent=1 // pred_check
      _
    $region15: #{tpu_custom_call.1} parent=1 // pred_check_branch
      %38 = sbr.rel (0) target = $region17
    $region16: #{tpu_custom_call.1} parent=1 // pred_region
      %39 = dma.done [#allocation6], 3840
    $region17: #{tpu_custom_call.1} parent=1 // pred_fallthru
      _
    %v41 = vld [vmem:[#allocation5] sm:$0xff]
    %v42 = vld [vmem:[#allocation5 + $0x8] sm:$0xff]
    %v43 = vld [vmem:[#allocation5 + $0x10] sm:$0x3]
    %v44 = vpack.c.bf16 %v42, %v41
    %v45 = vpack.c.bf16 %v43, %v43
    %v46 = vld [vmem:[#allocation5 + $0x18] sm:$0xff]
    %v47 = vld [vmem:[#allocation5 + $0x20] sm:$0xff]
    %v48 = vld [vmem:[#allocation5 + $0x28] sm:$0xff]
    %v49 = vld [vmem:[#allocation5 + $0x30] sm:$0xff]
    %v50 = vpack.c.bf16 %v47, %v46
    %v51 = vpack.c.bf16 %v49, %v48
    %v52 = vld [vmem:[#allocation5 + $0x38] sm:$0x1]
    %v53 = vld [vmem:[#allocation5 + $0x40] sm:$0xff]
    %v54 = vld [vmem:[#allocation5 + $0x48] sm:$0xff]
    %v55 = vld [vmem:[#allocation5 + $0x50] sm:$0xff]
    %v56 = vld [vmem:[#allocation5 + $0x58] sm:$0xff]
    %v57 = vpack.c.bf16 %v54, %v53
    %v58 = vpack.c.bf16 %v56, %v55
    %v59 = vld [vmem:[#allocation5 + $0x60] sm:$0x1]
    %v60 = vld [vmem:[#allocation5 + $0x68] sm:$0xff]
    %v61 = vld [vmem:[#allocation5 + $0x70] sm:$0xff]
    %v62 = vld [vmem:[#allocation5 + $0x78] sm:$0xff]
    %v63 = vld [vmem:[#allocation5 + $0x80] sm:$0xff]
    %v64 = vld [vmem:[#allocation5 + $0x88] sm:$0xff]
    %v65 = vld [vmem:[#allocation5 + $0x90] sm:$0xff]
    %v66 = vld [vmem:[#allocation5 + $0x98] sm:$0xff]
    %v67 = vld [vmem:[#allocation5 + $0xa0] sm:$0xff]
    %v68 = vld [vmem:[#allocation5 + $0xa8] sm:$0xff]
    %v69 = vld [vmem:[#allocation5 + $0xb0] sm:$0xff]
    %v70 = vld [vmem:[#allocation5 + $0xb8] sm:$0xff]
    %v71 = vld [vmem:[#allocation5 + $0xc0] sm:$0xff]
    %v72 = vld [vmem:[#allocation5 + $0xc8] sm:$0xff]
    %v73 = vld [vmem:[#allocation5 + $0xd0] sm:$0xff]
    %v74 = vld [vmem:[#allocation5 + $0xd8] sm:$0xff]
    %v75 = vld [vmem:[#allocation5 + $0xe0] sm:$0xff]
    %v76 = vpack.c.bf16 %v61, %v60
    %v77 = vpack.c.bf16 %v63, %v62
    %v78 = vpack.c.bf16 %v65, %v64
    %v79 = vpack.c.bf16 %v67, %v66
    %v80 = vpack.c.bf16 %v69, %v68
    %v81 = vpack.c.bf16 %v71, %v70
    %v82 = vpack.c.bf16 %v73, %v72
    %v83 = vpack.c.bf16 %v75, %v74
    %v84 = vld [vmem:[#allocation5 + $0xe8] sm:$0x1]
    %v85 = vld [vmem:[#allocation2] sm:$0xff]
    %v86 = vld [vmem:[#allocation2 + $0x8] sm:$0xff]
    %v87 = vld [vmem:[#allocation2 + $0x10] sm:$0xff]
    %v88 = vld [vmem:[#allocation2 + $0x18] sm:$0xff]
    %v89 = vld [vmem:[#allocation2 + $0x20] sm:$0xff]
    %v90 = vld [vmem:[#allocation2 + $0x28] sm:$0xff]
    %v91 = vld [vmem:[#allocation2 + $0x30] sm:$0xff]
    %v92 = vld [vmem:[#allocation2 + $0x38] sm:$0xff]
    %v93 = vpack.c.bf16 %v86, %v85
    %v94 = vpack.c.bf16 %v88, %v87
    %v95 = vpack.c.bf16 %v90, %v89
    %v96 = vpack.c.bf16 %v92, %v91
    %v97 = vlaneseq
    %v98 = vshrl.u32 %v97, 7
    %v99 = vsub.s32 0, %v98
    %v100 = vrot.slane %v52, %v99
    %vm101 = vcmask 146432
    %v103 = vsel %vm101, %v93, 0
    %v106 = vsel %vm101, %v94, 0
    %v109 = vsel %vm101, %v95, 0
    %v112 = vsel %vm101, %v96, 0
    %vm114 = vcmask 1040384
    %v116 = vsel %vm114, %v45, 0
    %118 = vmatprep.subr.bf16.mxu0 0
    %119 = vmatpush1.bf16.msra.mxu0 %v44
    %120 = vmatprep.subr.bf16.mxu0 0
    %121 = vmatpush1.bf16.msra.mxu0 %v116
    %122 = vmatprep.subr.bf16.mxu0 0
    %123 = vmatpush1.bf16.msra.mxu0 0
    %124 = vmatprep.subr.bf16.mxu0 0
    %125 = vmatpush1.bf16.msra.mxu0 0
    %126 = vmatprep.subr.bf16.mxu0 0
    %127 = vmatpush1.bf16.msra.mxu0 0
    %128 = vmatprep.subr.bf16.mxu0 0
    %129 = vmatpush1.bf16.msra.mxu0 0
    %130 = vmatprep.subr.bf16.mxu0 0
    %131 = vmatpush1.bf16.msra.mxu0 0
    %132 = vmatprep.subr.bf16.mxu0 0
    %133 = vmatpush1.bf16.msra.mxu0 0
    %134 = vmatprep.subr.bf16.mxu0 0
    %135 = vmatpush1.bf16.msra.mxu0 0
    %136 = vmatprep.subr.bf16.mxu0 0
    %137 = vmatpush1.bf16.msra.mxu0 0
    %138 = vmatprep.subr.bf16.mxu0 0
    %139 = vmatpush1.bf16.msra.mxu0 0
    %140 = vmatprep.subr.bf16.mxu0 0
    %141 = vmatpush1.bf16.msra.mxu0 0
    %142 = vmatprep.subr.bf16.mxu0 0
    %143 = vmatpush1.bf16.msra.mxu0 0
    %144 = vmatprep.subr.bf16.mxu0 0
    %145 = vmatpush1.bf16.msra.mxu0 0
    %146 = vmatprep.subr.bf16.mxu0 0
    %147 = vmatpush1.bf16.msra.mxu0 0
    %148 = vmatprep.subr.bf16.mxu0 0
    %149 = vmatpush1.bf16.msra.mxu0 0
    %150 = vmatprep.mubr.bf16.mxu0 0
    %151 = vmatmul.mubr.bf16.gmra.mrb[0].mxu0 %v103
    %v152 = vpop.f32.mrb[0].mxu0
    %v153 = vadd.f32 %v100, %v152
    %v154 = vpop.f32.mrb[0].mxu0
    %v155 = vpop.f32.mrb[0].mxu0
    %v156 = vadd.f32 %v100, %v155
    %v157 = vpop.f32.mrb[0].mxu0
    %158 = vmatprep.mubr.bf16.mxu0 0
    %159 = vmatmul.mubr.bf16.gmra.mrb[0].mxu0 %v106
    %v160 = vpop.f32.mrb[0].mxu0
    %v161 = vadd.f32 %v100, %v160
    %v162 = vpop.f32.mrb[0].mxu0
    %v163 = vpop.f32.mrb[0].mxu0
    %v164 = vadd.f32 %v100, %v163
    %v165 = vpop.f32.mrb[0].mxu0
    %166 = vmatprep.mubr.bf16.mxu0 0
    %167 = vmatmul.mubr.bf16.gmra.mrb[0].mxu0 %v109
    %v168 = vpop.f32.mrb[0].mxu0
    %v169 = vadd.f32 %v100, %v168
    %v170 = vpop.f32.mrb[0].mxu0
    %v171 = vpop.f32.mrb[0].mxu0
    %v172 = vadd.f32 %v100, %v171
    %v173 = vpop.f32.mrb[0].mxu0
    %174 = vmatprep.mubr.bf16.mxu0 0
    %175 = vmatmul.mubr.bf16.gmra.mrb[0].mxu0 %v112
    %v176 = vpop.f32.mrb[0].mxu0
    %v177 = vadd.f32 %v100, %v176
    %v178 = vpop.f32.mrb[0].mxu0
    %v179 = vpop.f32.mrb[0].mxu0
    %v180 = vadd.f32 %v100, %v179
    %v181 = vpop.f32.mrb[0].mxu0
    %182 = vdwg.mxu0
    %vm183 = vcmask 261120
    %v185 = vsel %vm183, 0, 0
    %187 = vmatprep.subr.bf16.mxu0 0
    %188 = vmatpush1.bf16.msra.mxu0 %v50
    %189 = vmatprep.subr.bf16.mxu0 0
    %190 = vmatpush1.bf16.msra.mxu0 %v51
    %191 = vmatprep.subr.bf16.mxu0 0
    %192 = vmatpush1.bf16.msra.mxu0 0
    %193 = vmatprep.subr.bf16.mxu0 0
    %194 = vmatpush1.bf16.msra.mxu0 0
    %195 = vmatprep.subr.bf16.mxu0 0
    %196 = vmatpush1.bf16.msra.mxu0 0
    %197 = vmatprep.subr.bf16.mxu0 0
    %198 = vmatpush1.bf16.msra.mxu0 0
    %199 = vmatprep.subr.bf16.mxu0 0
    %200 = vmatpush1.bf16.msra.mxu0 0
    %201 = vmatprep.subr.bf16.mxu0 0
    %202 = vmatpush1.bf16.msra.mxu0 0
    %203 = vmatprep.subr.bf16.mxu0 0
    %204 = vmatpush1.bf16.msra.mxu0 0
    %205 = vmatprep.subr.bf16.mxu0 0
    %206 = vmatpush1.bf16.msra.mxu0 0
    %207 = vmatprep.subr.bf16.mxu0 0
    %208 = vmatpush1.bf16.msra.mxu0 0
    %209 = vmatprep.subr.bf16.mxu0 0
    %210 = vmatpush1.bf16.msra.mxu0 0
    %211 = vmatprep.subr.bf16.mxu0 0
    %212 = vmatpush1.bf16.msra.mxu0 0
    %213 = vmatprep.subr.bf16.mxu0 0
    %214 = vmatpush1.bf16.msra.mxu0 0
    %215 = vmatprep.subr.bf16.mxu0 0
    %216 = vmatpush1.bf16.msra.mxu0 0
    %217 = vmatprep.subr.bf16.mxu0 0
    %218 = vmatpush1.bf16.msra.mxu0 0
    %219 = vmatprep.mubr.bf16.mxu0 0
    %220 = vmatmul.mubr.bf16.gmra.mrb[0].mxu0 %v185
    %v221 = vpop.f32.mrb[0].mxu0
    %v222 = vadd.f32 0.0, %v221
    %v223 = vpop.f32.mrb[0].mxu0
    %v224 = vpop.f32.mrb[0].mxu0
    %v225 = vpop.f32.mrb[0].mxu0
    %226 = vdwg.mxu0
    %v228 = vrot.slane %v222, 1
    %v229 = vrot.slane %v222, 2
    %v230 = vrot.slane %v222, 3
    %v231 = vrot.slane %v222, 4
    %v232 = vrot.slane %v222, 5
    %v233 = vrot.slane %v222, 6
    %v234 = vrot.slane %v222, 7
    %v243 = vadd.f32 %v153, %v222
    %v244 = vadd.f32 %v156, %v228
    %v245 = vadd.f32 %v161, %v229
    %v246 = vadd.f32 %v164, %v230
    %v247 = vadd.f32 %v169, %v231
    %v248 = vadd.f32 %v172, %v232
    %v249 = vadd.f32 %v177, %v233
    %v250 = vadd.f32 %v180, %v234
    %v251 = vxor.u32 %v243, 2147483648
    %v252 = vxor.u32 %v244, 2147483648
    %v253 = vxor.u32 %v245, 2147483648
    %v254 = vxor.u32 %v246, 2147483648
    %v255 = vxor.u32 %v247, 2147483648
    %v256 = vxor.u32 %v248, 2147483648
    %v257 = vxor.u32 %v249, 2147483648
    %v258 = vxor.u32 %v250, 2147483648
    %v259 = vmul.f32 %v251, 1.442695
    %v260 = vpow.pop %v259
    %v261 = vmul.f32 %v252, 1.442695
    %v262 = vpow.pop %v261
    %v263 = vmul.f32 %v253, 1.442695
    %v264 = vpow.pop %v263
    %v265 = vmul.f32 %v254, 1.442695
    %v266 = vpow.pop %v265
    %v267 = vmul.f32 %v255, 1.442695
    %v268 = vpow.pop %v267
    %v269 = vmul.f32 %v256, 1.442695
    %v270 = vpow.pop %v269
    %v271 = vmul.f32 %v257, 1.442695
    %v272 = vpow.pop %v271
    %v273 = vmul.f32 %v258, 1.442695
    %v274 = vpow.pop %v273
    %v275 = vadd.f32 %v260, 1.0
    %v276 = vadd.f32 %v262, 1.0
    %v277 = vadd.f32 %v264, 1.0
    %v278 = vadd.f32 %v266, 1.0
    %v279 = vadd.f32 %v268, 1.0
    %v280 = vadd.f32 %v270, 1.0
    %v281 = vadd.f32 %v272, 1.0
    %v282 = vadd.f32 %v274, 1.0
    %v283 = vrcp.pop %v275
    %v284 = vmul.f32 1.0, %v283
    %v285 = vrcp.pop %v276
    %v286 = vmul.f32 1.0, %v285
    %v287 = vrcp.pop %v277
    %v288 = vmul.f32 1.0, %v287
    %v289 = vrcp.pop %v278
    %v290 = vmul.f32 1.0, %v289
    %v291 = vrcp.pop %v279
    %v292 = vmul.f32 1.0, %v291
    %v293 = vrcp.pop %v280
    %v294 = vmul.f32 1.0, %v293
    %v295 = vrcp.pop %v281
    %v296 = vmul.f32 1.0, %v295
    %v297 = vrcp.pop %v282
    %v298 = vmul.f32 1.0, %v297
    %v299 = vtanh.pop %v243
    %v300 = vtanh.pop %v244
    %v301 = vtanh.pop %v245
    %v302 = vtanh.pop %v246
    %v303 = vtanh.pop %v247
    %v304 = vtanh.pop %v248
    %v305 = vtanh.pop %v249
    %v306 = vtanh.pop %v250
    %v307 = vmul.f32 %v284, 0.0
    %v308 = vmul.f32 %v286, 0.0
    %v309 = vmul.f32 %v288, 0.0
    %v310 = vmul.f32 %v290, 0.0
    %v311 = vmul.f32 %v292, 0.0
    %v312 = vmul.f32 %v294, 0.0
    %v313 = vmul.f32 %v296, 0.0
    %v314 = vmul.f32 %v298, 0.0
    %323 = vrot.lane.b32.xlu0 %v299, 64
    %v324 = vpop.permute.xlu0 %323
    %325 = vrot.lane.b32.xlu0 %v300, 64
    %v326 = vpop.permute.xlu0 %325
    %327 = vrot.lane.b32.xlu0 %v301, 64
    %v328 = vpop.permute.xlu0 %327
    %329 = vrot.lane.b32.xlu0 %v302, 64
    %v330 = vpop.permute.xlu0 %329
    %331 = vrot.lane.b32.xlu0 %v303, 64
    %v332 = vpop.permute.xlu0 %331
    %333 = vrot.lane.b32.xlu0 %v304, 64
    %v334 = vpop.permute.xlu0 %333
    %335 = vrot.lane.b32.xlu0 %v305, 64
    %v336 = vpop.permute.xlu0 %335
    %337 = vrot.lane.b32.xlu0 %v306, 64
    %v338 = vpop.permute.xlu0 %337
    %v347 = vmul.f32 %v284, %v324
    %v348 = vmul.f32 %v286, %v326
    %v349 = vmul.f32 %v288, %v328
    %v350 = vmul.f32 %v290, %v330
    %v351 = vmul.f32 %v292, %v332
    %v352 = vmul.f32 %v294, %v334
    %v353 = vmul.f32 %v296, %v336
    %v354 = vmul.f32 %v298, %v338
    %363 = vrot.lane.b32.xlu0 %v347, 32
    %v364 = vpop.permute.xlu0 %363
    %365 = vrot.lane.b32.xlu0 %v348, 32
    %v366 = vpop.permute.xlu0 %365
    %367 = vrot.lane.b32.xlu0 %v349, 32
    %v368 = vpop.permute.xlu0 %367
    %369 = vrot.lane.b32.xlu0 %v350, 32
    %v370 = vpop.permute.xlu0 %369
    %371 = vrot.lane.b32.xlu0 %v351, 32
    %v372 = vpop.permute.xlu0 %371
    %373 = vrot.lane.b32.xlu0 %v352, 32
    %v374 = vpop.permute.xlu0 %373
    %375 = vrot.lane.b32.xlu0 %v353, 32
    %v376 = vpop.permute.xlu0 %375
    %377 = vrot.lane.b32.xlu0 %v354, 32
    %v378 = vpop.permute.xlu0 %377
    %v387 = vadd.f32 %v307, %v364
    %v388 = vadd.f32 %v308, %v366
    %v389 = vadd.f32 %v309, %v368
    %v390 = vadd.f32 %v310, %v370
    %v391 = vadd.f32 %v311, %v372
    %v392 = vadd.f32 %v312, %v374
    %v393 = vadd.f32 %v313, %v376
    %v394 = vadd.f32 %v314, %v378
    %v395 = vtanh.pop %v387
    %v396 = vtanh.pop %v388
    %v397 = vtanh.pop %v389
    %v398 = vtanh.pop %v390
    %v399 = vtanh.pop %v391
    %v400 = vtanh.pop %v392
    %v401 = vtanh.pop %v393
    %v402 = vtanh.pop %v394
    %411 = vrot.lane.b32.xlu0 %v395, 64
    %v412 = vpop.permute.xlu0 %411
    %413 = vrot.lane.b32.xlu0 %v396, 64
    %v414 = vpop.permute.xlu0 %413
    %415 = vrot.lane.b32.xlu0 %v397, 64
    %v416 = vpop.permute.xlu0 %415
    %417 = vrot.lane.b32.xlu0 %v398, 64
    %v418 = vpop.permute.xlu0 %417
    %419 = vrot.lane.b32.xlu0 %v399, 64
    %v420 = vpop.permute.xlu0 %419
    %421 = vrot.lane.b32.xlu0 %v400, 64
    %v422 = vpop.permute.xlu0 %421
    %423 = vrot.lane.b32.xlu0 %v401, 64
    %v424 = vpop.permute.xlu0 %423
    %425 = vrot.lane.b32.xlu0 %v402, 64
    %v426 = vpop.permute.xlu0 %425
    %v435 = vmul.f32 %v284, %v412
    %v436 = vmul.f32 %v286, %v414
    %v437 = vmul.f32 %v288, %v416
    %v438 = vmul.f32 %v290, %v418
    %v439 = vmul.f32 %v292, %v420
    %v440 = vmul.f32 %v294, %v422
    %v441 = vmul.f32 %v296, %v424
    %v442 = vmul.f32 %v298, %v426
    %v443 = vpack.c.bf16 %v435, %v435
    %v444 = vpack.c.bf16 %v436, %v436
    %v445 = vpack.c.bf16 %v437, %v437
    %v446 = vpack.c.bf16 %v438, %v438
    %v447 = vpack.c.bf16 %v439, %v439
    %v448 = vpack.c.bf16 %v440, %v440
    %v449 = vpack.c.bf16 %v441, %v441
    %v450 = vpack.c.bf16 %v442, %v442
    %v459 = vunpack.c.l.b16 %v443
    %v460 = vunpack.c.l.b16 %v444
    %v461 = vunpack.c.l.b16 %v445
    %v462 = vunpack.c.l.b16 %v446
    %v463 = vunpack.c.l.b16 %v447
    %v464 = vunpack.c.l.b16 %v448
    %v465 = vunpack.c.l.b16 %v449
    %v466 = vunpack.c.l.b16 %v450
    %v467 = vrot.slane %v460, 7
    %vm468 = vcmask 1041409
    %v469 = vsel %vm468, %v467, %v459
    %v470 = vrot.slane %v461, 6
    %vm471 = vcmask 1042434
    %v472 = vsel %vm471, %v470, %v469
    %v473 = vrot.slane %v462, 5
    %vm474 = vcmask 1043459
    %v475 = vsel %vm474, %v473, %v472
    %v476 = vrot.slane %v463, 4
    %vm477 = vcmask 1044484
    %v478 = vsel %vm477, %v476, %v475
    %v479 = vrot.slane %v464, 3
    %vm480 = vcmask 1045509
    %v481 = vsel %vm480, %v479, %v478
    %v482 = vrot.slane %v465, 2
    %vm483 = vcmask 1046534
    %v484 = vsel %vm483, %v482, %v481
    %v485 = vrot.slane %v466, 1
    %vm486 = vcmask 1047559
    %v487 = vsel %vm486, %v485, %v484
    %v488 = vpack.c.b16 %v487, %v487
    %489 = vrot.lane.b32.xlu0 %v488, 32
    %v490 = vpop.permute.xlu0 %489
    %v492 = vsel %vm183, %v490, 0
    %494 = vmatprep.subr.bf16.mxu0 0
    %495 = vmatpush1.bf16.msra.mxu0 %v50
    %496 = vmatprep.subr.bf16.mxu0 0
    %497 = vmatpush1.bf16.msra.mxu0 %v51
    %498 = vmatprep.subr.bf16.mxu0 0
    %499 = vmatpush1.bf16.msra.mxu0 0
    %500 = vmatprep.subr.bf16.mxu0 0
    %501 = vmatpush1.bf16.msra.mxu0 0
    %502 = vmatprep.subr.bf16.mxu0 0
    %503 = vmatpush1.bf16.msra.mxu0 0
    %504 = vmatprep.subr.bf16.mxu0 0
    %505 = vmatpush1.bf16.msra.mxu0 0
    %506 = vmatprep.subr.bf16.mxu0 0
    %507 = vmatpush1.bf16.msra.mxu0 0
    %508 = vmatprep.subr.bf16.mxu0 0
    %509 = vmatpush1.bf16.msra.mxu0 0
    %510 = vmatprep.subr.bf16.mxu0 0
    %511 = vmatpush1.bf16.msra.mxu0 0
    %512 = vmatprep.subr.bf16.mxu0 0
    %513 = vmatpush1.bf16.msra.mxu0 0
    %514 = vmatprep.subr.bf16.mxu0 0
    %515 = vmatpush1.bf16.msra.mxu0 0
    %516 = vmatprep.subr.bf16.mxu0 0
    %517 = vmatpush1.bf16.msra.mxu0 0
    %518 = vmatprep.subr.bf16.mxu0 0
    %519 = vmatpush1.bf16.msra.mxu0 0
    %520 = vmatprep.subr.bf16.mxu0 0
    %521 = vmatpush1.bf16.msra.mxu0 0
    %522 = vmatprep.subr.bf16.mxu0 0
    %523 = vmatpush1.bf16.msra.mxu0 0
    %524 = vmatprep.subr.bf16.mxu0 0
    %525 = vmatpush1.bf16.msra.mxu0 0
    %526 = vmatprep.mubr.bf16.mxu0 0
    %527 = vmatmul.mubr.bf16.gmra.mrb[0].mxu0 %v492
    %v528 = vpop.f32.mrb[0].mxu0
    %v529 = vadd.f32 0.0, %v528
    %v530 = vpop.f32.mrb[0].mxu0
    %v531 = vpop.f32.mrb[0].mxu0
    %v532 = vpop.f32.mrb[0].mxu0
    %533 = vdwg.mxu0
    %v535 = vrot.slane %v529, 7
    %v536 = vrot.slane %v529, 1
    %v537 = vrot.slane %v529, 2
    %v538 = vrot.slane %v529, 3
    %v539 = vrot.slane %v529, 4
    %v540 = vrot.slane %v529, 5
    %v541 = vrot.slane %v529, 6
    %v550 = vadd.f32 %v153, %v535
    %v551 = vadd.f32 %v156, %v529
    %v552 = vadd.f32 %v161, %v536
    %v553 = vadd.f32 %v164, %v537
    %v554 = vadd.f32 %v169, %v538
    %v555 = vadd.f32 %v172, %v539
    %v556 = vadd.f32 %v177, %v540
    %v557 = vadd.f32 %v180, %v541
    %v558 = vxor.u32 %v550, 2147483648
    %v559 = vxor.u32 %v551, 2147483648
    %v560 = vxor.u32 %v552, 2147483648
    %v561 = vxor.u32 %v553, 2147483648
    %v562 = vxor.u32 %v554, 2147483648
    %v563 = vxor.u32 %v555, 2147483648
    %v564 = vxor.u32 %v556, 2147483648
    %v565 = vxor.u32 %v557, 2147483648
    %v566 = vmul.f32 %v558, 1.442695
    %v567 = vpow.pop %v566
    %v568 = vmul.f32 %v559, 1.442695
    %v569 = vpow.pop %v568
    %v570 = vmul.f32 %v560, 1.442695
    %v571 = vpow.pop %v570
    %v572 = vmul.f32 %v561, 1.442695
    %v573 = vpow.pop %v572
    %v574 = vmul.f32 %v562, 1.442695
    %v575 = vpow.pop %v574
    %v576 = vmul.f32 %v563, 1.442695
    %v577 = vpow.pop %v576
    %v578 = vmul.f32 %v564, 1.442695
    %v579 = vpow.pop %v578
    %v580 = vmul.f32 %v565, 1.442695
    %v581 = vpow.pop %v580
    %v582 = vadd.f32 %v567, 1.0
    %v583 = vadd.f32 %v569, 1.0
    %v584 = vadd.f32 %v571, 1.0
    %v585 = vadd.f32 %v573, 1.0
    %v586 = vadd.f32 %v575, 1.0
    %v587 = vadd.f32 %v577, 1.0
    %v588 = vadd.f32 %v579, 1.0
    %v589 = vadd.f32 %v581, 1.0
    %v590 = vrcp.pop %v582
    %v591 = vmul.f32 1.0, %v590
    %v592 = vrcp.pop %v583
    %v593 = vmul.f32 1.0, %v592
    %v594 = vrcp.pop %v584
    %v595 = vmul.f32 1.0, %v594
    %v596 = vrcp.pop %v585
    %v597 = vmul.f32 1.0, %v596
    %v598 = vrcp.pop %v586
    %v599 = vmul.f32 1.0, %v598
    %v600 = vrcp.pop %v587
    %v601 = vmul.f32 1.0, %v600
    %v602 = vrcp.pop %v588
    %v603 = vmul.f32 1.0, %v602
    %v604 = vrcp.pop %v589
    %v605 = vmul.f32 1.0, %v604
    %v606 = vtanh.pop %v550
    %v607 = vtanh.pop %v551
    %v608 = vtanh.pop %v552
    %v609 = vtanh.pop %v553
    %v610 = vtanh.pop %v554
    %v611 = vtanh.pop %v555
    %v612 = vtanh.pop %v556
    %v613 = vtanh.pop %v557
    %v622 = vrot.slane %v387, 7
    %v623 = vrot.slane %v388, 7
    %v624 = vrot.slane %v389, 7
    %v625 = vrot.slane %v390, 7
    %v626 = vrot.slane %v391, 7
    %v627 = vrot.slane %v392, 7
    %v628 = vrot.slane %v393, 7
    %v629 = vrot.slane %v394, 7
    %v638 = vmul.f32 %v591, %v622
    %v639 = vmul.f32 %v593, %v623
    %v640 = vmul.f32 %v595, %v624
    %v641 = vmul.f32 %v597, %v625
    %v642 = vmul.f32 %v599, %v626
    %v643 = vmul.f32 %v601, %v627
    %v644 = vmul.f32 %v603, %v628
    %v645 = vmul.f32 %v605, %v629
    %654 = vrot.lane.b32.xlu0 %v606, 64
    %v655 = vpop.permute.xlu0 %654
    %656 = vrot.lane.b32.xlu0 %v607, 64
    %v657 = vpop.permute.xlu0 %656
    %658 = vrot.lane.b32.xlu0 %v608, 64
    %v659 = vpop.permute.xlu0 %658
    %660 = vrot.lane.b32.xlu0 %v609, 64
    %v661 = vpop.permute.xlu0 %660
    %662 = vrot.lane.b32.xlu0 %v610, 64
    %v663 = vpop.permute.xlu0 %662
    %664 = vrot.lane.b32.xlu0 %v611, 64
    %v665 = vpop.permute.xlu0 %664
    %666 = vrot.lane.b32.xlu0 %v612, 64
    %v667 = vpop.permute.xlu0 %666
    %668 = vrot.lane.b32.xlu0 %v613, 64
    %v669 = vpop.permute.xlu0 %668
    %v678 = vmul.f32 %v591, %v655
    %v679 = vmul.f32 %v593, %v657
    %v680 = vmul.f32 %v595, %v659
    %v681 = vmul.f32 %v597, %v661
    %v682 = vmul.f32 %v599, %v663
    %v683 = vmul.f32 %v601, %v665
    %v684 = vmul.f32 %v603, %v667
    %v685 = vmul.f32 %v605, %v669
    %694 = vrot.lane.b32.xlu0 %v678, 32
    %v695 = vpop.permute.xlu0 %694
    %696 = vrot.lane.b32.xlu0 %v679, 32
    %v697 = vpop.permute.xlu0 %696
    %698 = vrot.lane.b32.xlu0 %v680, 32
    %v699 = vpop.permute.xlu0 %698
    %700 = vrot.lane.b32.xlu0 %v681, 32
    %v701 = vpop.permute.xlu0 %700
    %702 = vrot.lane.b32.xlu0 %v682, 32
    %v703 = vpop.permute.xlu0 %702
    %704 = vrot.lane.b32.xlu0 %v683, 32
    %v705 = vpop.permute.xlu0 %704
    %706 = vrot.lane.b32.xlu0 %v684, 32
    %v707 = vpop.permute.xlu0 %706
    %708 = vrot.lane.b32.xlu0 %v685, 32
    %v709 = vpop.permute.xlu0 %708
    %v718 = vadd.f32 %v638, %v695
    %v719 = vadd.f32 %v639, %v697
    %v720 = vadd.f32 %v640, %v699
    %v721 = vadd.f32 %v641, %v701
    %v722 = vadd.f32 %v642, %v703
    %v723 = vadd.f32 %v643, %v705
    %v724 = vadd.f32 %v644, %v707
    %v725 = vadd.f32 %v645, %v709
    %v726 = vtanh.pop %v718
    %v727 = vtanh.pop %v719
    %v728 = vtanh.pop %v720
    %v729 = vtanh.pop %v721
    %v730 = vtanh.pop %v722
    %v731 = vtanh.pop %v723
    %v732 = vtanh.pop %v724
    %v733 = vtanh.pop %v725
    %742 = vrot.lane.b32.xlu0 %v726, 64
    %v743 = vpop.permute.xlu0 %742
    %744 = vrot.lane.b32.xlu0 %v727, 64
    %v745 = vpop.permute.xlu0 %744
    %746 = vrot.lane.b32.xlu0 %v728, 64
    %v747 = vpop.permute.xlu0 %746
    %748 = vrot.lane.b32.xlu0 %v729, 64
    %v749 = vpop.permute.xlu0 %748
    %750 = vrot.lane.b32.xlu0 %v730, 64
    %v751 = vpop.permute.xlu0 %750
    %752 = vrot.lane.b32.xlu0 %v731, 64
    %v753 = vpop.permute.xlu0 %752
    %754 = vrot.lane.b32.xlu0 %v732, 64
    %v755 = vpop.permute.xlu0 %754
    %756 = vrot.lane.b32.xlu0 %v733, 64
    %v757 = vpop.permute.xlu0 %756
    %v766 = vmul.f32 %v591, %v743
    %v767 = vmul.f32 %v593, %v745
    %v768 = vmul.f32 %v595, %v747
    %v769 = vmul.f32 %v597, %v749
    %v770 = vmul.f32 %v599, %v751
    %v771 = vmul.f32 %v601, %v753
    %v772 = vmul.f32 %v603, %v755
    %v773 = vmul.f32 %v605, %v757
    %v774 = vpack.c.bf16 %v766, %v766
    %v775 = vpack.c.bf16 %v767, %v767
    %v776 = vpack.c.bf16 %v768, %v768
    %v777 = vpack.c.bf16 %v769, %v769
    %v778 = vpack.c.bf16 %v770, %v770
    %v779 = vpack.c.bf16 %v771, %v771
    %v780 = vpack.c.bf16 %v772, %v772
    %v781 = vpack.c.bf16 %v773, %v773
    %v790 = vunpack.c.l.b16 %v774
    %v791 = vunpack.c.l.b16 %v775
    %v792 = vunpack.c.l.b16 %v776
    %v793 = vunpack.c.l.b16 %v777
    %v794 = vunpack.c.l.b16 %v778
    %v795 = vunpack.c.l.b16 %v779
    %v796 = vunpack.c.l.b16 %v780
    %v797 = vunpack.c.l.b16 %v781
    %v798 = vrot.slane %v790, 1
    %v799 = vsel %vm468, %v791, %v798
    %v800 = vrot.slane %v792, 7
    %v801 = vsel %vm471, %v800, %v799
    %v802 = vrot.slane %v793, 6
    %v803 = vsel %vm474, %v802, %v801
    %v804 = vrot.slane %v794, 5
    %v805 = vsel %vm477, %v804, %v803
    %v806 = vrot.slane %v795, 4
    %v807 = vsel %vm480, %v806, %v805
    %v808 = vrot.slane %v796, 3
    %v809 = vsel %vm483, %v808, %v807
    %v810 = vrot.slane %v797, 2
    %v811 = vsel %vm486, %v810, %v809
    %v812 = vpack.c.b16 %v811, %v811
    %813 = vrot.lane.b32.xlu0 %v812, 32
    %v814 = vpop.permute.xlu0 %813
    %v816 = vsel %vm183, %v814, 0
    %818 = vmatprep.subr.bf16.mxu0 0
    %819 = vmatpush1.bf16.msra.mxu0 %v50
    %820 = vmatprep.subr.bf16.mxu0 0
    %821 = vmatpush1.bf16.msra.mxu0 %v51
    %822 = vmatprep.subr.bf16.mxu0 0
    %823 = vmatpush1.bf16.msra.mxu0 0
    %824 = vmatprep.subr.bf16.mxu0 0
    %825 = vmatpush1.bf16.msra.mxu0 0
    %826 = vmatprep.subr.bf16.mxu0 0
    %827 = vmatpush1.bf16.msra.mxu0 0
    %828 = vmatprep.subr.bf16.mxu0 0
    %829 = vmatpush1.bf16.msra.mxu0 0
    %830 = vmatprep.subr.bf16.mxu0 0
    %831 = vmatpush1.bf16.msra.mxu0 0
    %832 = vmatprep.subr.bf16.mxu0 0
    %833 = vmatpush1.bf16.msra.mxu0 0
    %834 = vmatprep.subr.bf16.mxu0 0
    %835 = vmatpush1.bf16.msra.mxu0 0
    %836 = vmatprep.subr.bf16.mxu0 0
    %837 = vmatpush1.bf16.msra.mxu0 0
    %838 = vmatprep.subr.bf16.mxu0 0
    %839 = vmatpush1.bf16.msra.mxu0 0
    %840 = vmatprep.subr.bf16.mxu0 0
    %841 = vmatpush1.bf16.msra.mxu0 0
    %842 = vmatprep.subr.bf16.mxu0 0
    %843 = vmatpush1.bf16.msra.mxu0 0
    %844 = vmatprep.subr.bf16.mxu0 0
    %845 = vmatpush1.bf16.msra.mxu0 0
    %846 = vmatprep.subr.bf16.mxu0 0
    %847 = vmatpush1.bf16.msra.mxu0 0
    %848 = vmatprep.subr.bf16.mxu0 0
    %849 = vmatpush1.bf16.msra.mxu0 0
    %850 = vmatprep.mubr.bf16.mxu0 0
    %851 = vmatmul.mubr.bf16.gmra.mrb[0].mxu0 %v816
    %v852 = vpop.f32.mrb[0].mxu0
    %v853 = vadd.f32 0.0, %v852
    %v854 = vpop.f32.mrb[0].mxu0
    %v855 = vpop.f32.mrb[0].mxu0
    %v856 = vpop.f32.mrb[0].mxu0
    %857 = vdwg.mxu0
    %v859 = vrot.slane %v853, 6
    %v860 = vrot.slane %v853, 7
    %v861 = vrot.slane %v853, 1
    %v862 = vrot.slane %v853, 2
    %v863 = vrot.slane %v853, 3
    %v864 = vrot.slane %v853, 4
    %v865 = vrot.slane %v853, 5
    %v874 = vadd.f32 %v153, %v859
    %v875 = vadd.f32 %v156, %v860
    %v876 = vadd.f32 %v161, %v853
    %v877 = vadd.f32 %v164, %v861
    %v878 = vadd.f32 %v169, %v862
    %v879 = vadd.f32 %v172, %v863
    %v880 = vadd.f32 %v177, %v864
    %v881 = vadd.f32 %v180, %v865
    %v882 = vxor.u32 %v874, 2147483648
    %v883 = vxor.u32 %v875, 2147483648
    %v884 = vxor.u32 %v876, 2147483648
    %v885 = vxor.u32 %v877, 2147483648
    %v886 = vxor.u32 %v878, 2147483648
    %v887 = vxor.u32 %v879, 2147483648
    %v888 = vxor.u32 %v880, 2147483648
    %v889 = vxor.u32 %v881, 2147483648
    %v890 = vmul.f32 %v882, 1.442695
    %v891 = vpow.pop %v890
    %v892 = vmul.f32 %v883, 1.442695
    %v893 = vpow.pop %v892
    %v894 = vmul.f32 %v884, 1.442695
    %v895 = vpow.pop %v894
    %v896 = vmul.f32 %v885, 1.442695
    %v897 = vpow.pop %v896
    %v898 = vmul.f32 %v886, 1.442695
    %v899 = vpow.pop %v898
    %v900 = vmul.f32 %v887, 1.442695
    %v901 = vpow.pop %v900
    %v902 = vmul.f32 %v888, 1.442695
    %v903 = vpow.pop %v902
    %v904 = vmul.f32 %v889, 1.442695
    %v905 = vpow.pop %v904
    %v906 = vadd.f32 %v891, 1.0
    %v907 = vadd.f32 %v893, 1.0
    %v908 = vadd.f32 %v895, 1.0
    %v909 = vadd.f32 %v897, 1.0
    %v910 = vadd.f32 %v899, 1.0
    %v911 = vadd.f32 %v901, 1.0
    %v912 = vadd.f32 %v903, 1.0
    %v913 = vadd.f32 %v905, 1.0
    %v914 = vrcp.pop %v906
    %v915 = vmul.f32 1.0, %v914
    %v916 = vrcp.pop %v907
    %v917 = vmul.f32 1.0, %v916
    %v918 = vrcp.pop %v908
    %v919 = vmul.f32 1.0, %v918
    %v920 = vrcp.pop %v909
    %v921 = vmul.f32 1.0, %v920
    %v922 = vrcp.pop %v910
    %v923 = vmul.f32 1.0, %v922
    %v924 = vrcp.pop %v911
    %v925 = vmul.f32 1.0, %v924
    %v926 = vrcp.pop %v912
    %v927 = vmul.f32 1.0, %v926
    %v928 = vrcp.pop %v913
    %v929 = vmul.f32 1.0, %v928
    %v930 = vtanh.pop %v874
    %v931 = vtanh.pop %v875
    %v932 = vtanh.pop %v876
    %v933 = vtanh.pop %v877
    %v934 = vtanh.pop %v878
    %v935 = vtanh.pop %v879
    %v936 = vtanh.pop %v880
    %v937 = vtanh.pop %v881
    %v946 = vrot.slane %v718, 7
    %v947 = vrot.slane %v719, 7
    %v948 = vrot.slane %v720, 7
    %v949 = vrot.slane %v721, 7
    %v950 = vrot.slane %v722, 7
    %v951 = vrot.slane %v723, 7
    %v952 = vrot.slane %v724, 7
    %v953 = vrot.slane %v725, 7
    %v962 = vmul.f32 %v915, %v946
    %v963 = vmul.f32 %v917, %v947
    %v964 = vmul.f32 %v919, %v948
    %v965 = vmul.f32 %v921, %v949
    %v966 = vmul.f32 %v923, %v950
    %v967 = vmul.f32 %v925, %v951
    %v968 = vmul.f32 %v927, %v952
    %v969 = vmul.f32 %v929, %v953
    %978 = vrot.lane.b32.xlu0 %v930, 64
    %v979 = vpop.permute.xlu0 %978
    %980 = vrot.lane.b32.xlu0 %v931, 64
    %v981 = vpop.permute.xlu0 %980
    %982 = vrot.lane.b32.xlu0 %v932, 64
    %v983 = vpop.permute.xlu0 %982
    %984 = vrot.lane.b32.xlu0 %v933, 64
    %v985 = vpop.permute.xlu0 %984
    %986 = vrot.lane.b32.xlu0 %v934, 64
    %v987 = vpop.permute.xlu0 %986
    %988 = vrot.lane.b32.xlu0 %v935, 64
    %v989 = vpop.permute.xlu0 %988
    %990 = vrot.lane.b32.xlu0 %v936, 64
    %v991 = vpop.permute.xlu0 %990
    %992 = vrot.lane.b32.xlu0 %v937, 64
    %v993 = vpop.permute.xlu0 %992
    %v1002 = vmul.f32 %v915, %v979
    %v1003 = vmul.f32 %v917, %v981
    %v1004 = vmul.f32 %v919, %v983
    %v1005 = vmul.f32 %v921, %v985
    %v1006 = vmul.f32 %v923, %v987
    %v1007 = vmul.f32 %v925, %v989
    %v1008 = vmul.f32 %v927, %v991
    %v1009 = vmul.f32 %v929, %v993
    %1018 = vrot.lane.b32.xlu0 %v1002, 32
    %v1019 = vpop.permute.xlu0 %1018
    %1020 = vrot.lane.b32.xlu0 %v1003, 32
    %v1021 = vpop.permute.xlu0 %1020
    %1022 = vrot.lane.b32.xlu0 %v1004, 32
    %v1023 = vpop.permute.xlu0 %1022
    %1024 = vrot.lane.b32.xlu0 %v1005, 32
    %v1025 = vpop.permute.xlu0 %1024
    %1026 = vrot.lane.b32.xlu0 %v1006, 32
    %v1027 = vpop.permute.xlu0 %1026
    %1028 = vrot.lane.b32.xlu0 %v1007, 32
    %v1029 = vpop.permute.xlu0 %1028
    %1030 = vrot.lane.b32.xlu0 %v1008, 32
    %v1031 = vpop.permute.xlu0 %1030
    %1032 = vrot.lane.b32.xlu0 %v1009, 32
    %v1033 = vpop.permute.xlu0 %1032
    %v1042 = vadd.f32 %v962, %v1019
    %v1043 = vadd.f32 %v963, %v1021
    %v1044 = vadd.f32 %v964, %v1023
    %v1045 = vadd.f32 %v965, %v1025
    %v1046 = vadd.f32 %v966, %v1027
    %v1047 = vadd.f32 %v967, %v1029
    %v1048 = vadd.f32 %v968, %v1031
    %v1049 = vadd.f32 %v969, %v1033
    %v1050 = vtanh.pop %v1042
    %v1051 = vtanh.pop %v1043
    %v1052 = vtanh.pop %v1044
    %v1053 = vtanh.pop %v1045
    %v1054 = vtanh.pop %v1046
    %v1055 = vtanh.pop %v1047
    %v1056 = vtanh.pop %v1048
    %v1057 = vtanh.pop %v1049
    %1066 = vrot.lane.b32.xlu0 %v1050, 64
    %v1067 = vpop.permute.xlu0 %1066
    %1068 = vrot.lane.b32.xlu0 %v1051, 64
    %v1069 = vpop.permute.xlu0 %1068
    %1070 = vrot.lane.b32.xlu0 %v1052, 64
    %v1071 = vpop.permute.xlu0 %1070
    %1072 = vrot.lane.b32.xlu0 %v1053, 64
    %v1073 = vpop.permute.xlu0 %1072
    %1074 = vrot.lane.b32.xlu0 %v1054, 64
    %v1075 = vpop.permute.xlu0 %1074
    %1076 = vrot.lane.b32.xlu0 %v1055, 64
    %v1077 = vpop.permute.xlu0 %1076
    %1078 = vrot.lane.b32.xlu0 %v1056, 64
    %v1079 = vpop.permute.xlu0 %1078
    %1080 = vrot.lane.b32.xlu0 %v1057, 64
    %v1081 = vpop.permute.xlu0 %1080
    %v1090 = vmul.f32 %v915, %v1067
    %v1091 = vmul.f32 %v917, %v1069
    %v1092 = vmul.f32 %v919, %v1071
    %v1093 = vmul.f32 %v921, %v1073
    %v1094 = vmul.f32 %v923, %v1075
    %v1095 = vmul.f32 %v925, %v1077
    %v1096 = vmul.f32 %v927, %v1079
    %v1097 = vmul.f32 %v929, %v1081
    %v1098 = vpack.c.bf16 %v1090, %v1090
    %v1099 = vpack.c.bf16 %v1091, %v1091
    %v1100 = vpack.c.bf16 %v1092, %v1092
    %v1101 = vpack.c.bf16 %v1093, %v1093
    %v1102 = vpack.c.bf16 %v1094, %v1094
    %v1103 = vpack.c.bf16 %v1095, %v1095
    %v1104 = vpack.c.bf16 %v1096, %v1096
    %v1105 = vpack.c.bf16 %v1097, %v1097
    %v1114 = vunpack.c.l.b16 %v1098
    %v1115 = vunpack.c.l.b16 %v1099
    %v1116 = vunpack.c.l.b16 %v1100
    %v1117 = vunpack.c.l.b16 %v1101
    %v1118 = vunpack.c.l.b16 %v1102
    %v1119 = vunpack.c.l.b16 %v1103
    %v1120 = vunpack.c.l.b16 %v1104
    %v1121 = vunpack.c.l.b16 %v1105
    %v1122 = vrot.slane %v1114, 2
    %v1123 = vrot.slane %v1115, 1
    %v1124 = vsel %vm468, %v1123, %v1122
    %v1125 = vsel %vm471, %v1116, %v1124
    %v1126 = vrot.slane %v1117, 7
    %v1127 = vsel %vm474, %v1126, %v1125
    %v1128 = vrot.slane %v1118, 6
    %v1129 = vsel %vm477, %v1128, %v1127
    %v1130 = vrot.slane %v1119, 5
    %v1131 = vsel %vm480, %v1130, %v1129
    %v1132 = vrot.slane %v1120, 4
    %v1133 = vsel %vm483, %v1132, %v1131
    %v1134 = vrot.slane %v1121, 3
    %v1135 = vsel %vm486, %v1134, %v1133
    %v1136 = vpack.c.b16 %v1135, %v1135
    %1137 = vrot.lane.b32.xlu0 %v1136, 32
    %v1138 = vpop.permute.xlu0 %1137
    %v1140 = vsel %vm183, %v1138, 0
    %1142 = vmatprep.subr.bf16.mxu0 0
    %1143 = vmatpush1.bf16.msra.mxu0 %v50
    %1144 = vmatprep.subr.bf16.mxu0 0
    %1145 = vmatpush1.bf16.msra.mxu0 %v51
    %1146 = vmatprep.subr.bf16.mxu0 0
    %1147 = vmatpush1.bf16.msra.mxu0 0
    %1148 = vmatprep.subr.bf16.mxu0 0
    %1149 = vmatpush1.bf16.msra.mxu0 0
    %1150 = vmatprep.subr.bf16.mxu0 0
    %1151 = vmatpush1.bf16.msra.mxu0 0
    %1152 = vmatprep.subr.bf16.mxu0 0
    %1153 = vmatpush1.bf16.msra.mxu0 0
    %1154 = vmatprep.subr.bf16.mxu0 0
    %1155 = vmatpush1.bf16.msra.mxu0 0
    %1156 = vmatprep.subr.bf16.mxu0 0
    %1157 = vmatpush1.bf16.msra.mxu0 0
    %1158 = vmatprep.subr.bf16.mxu0 0
    %1159 = vmatpush1.bf16.msra.mxu0 0
    %1160 = vmatprep.subr.bf16.mxu0 0
    %1161 = vmatpush1.bf16.msra.mxu0 0
    %1162 = vmatprep.subr.bf16.mxu0 0
    %1163 = vmatpush1.bf16.msra.mxu0 0
    %1164 = vmatprep.subr.bf16.mxu0 0
    %1165 = vmatpush1.bf16.msra.mxu0 0
    %1166 = vmatprep.subr.bf16.mxu0 0
    %1167 = vmatpush1.bf16.msra.mxu0 0
    %1168 = vmatprep.subr.bf16.mxu0 0
    %1169 = vmatpush1.bf16.msra.mxu0 0
    %1170 = vmatprep.subr.bf16.mxu0 0
    %1171 = vmatpush1.bf16.msra.mxu0 0
    %1172 = vmatprep.subr.bf16.mxu0 0
    %1173 = vmatpush1.bf16.msra.mxu0 0
    %1174 = vmatprep.mubr.bf16.mxu0 0
    %1175 = vmatmul.mubr.bf16.gmra.mrb[0].mxu0 %v1140
    %v1176 = vpop.f32.mrb[0].mxu0
    %v1177 = vadd.f32 0.0, %v1176
    %v1178 = vpop.f32.mrb[0].mxu0
    %v1179 = vpop.f32.mrb[0].mxu0
    %v1180 = vpop.f32.mrb[0].mxu0
    %1181 = vdwg.mxu0
    %v1183 = vrot.slane %v1177, 5
    %v1184 = vrot.slane %v1177, 6
    %v1185 = vrot.slane %v1177, 7
    %v1186 = vrot.slane %v1177, 1
    %v1187 = vrot.slane %v1177, 2
    %v1188 = vrot.slane %v1177, 3
    %v1189 = vrot.slane %v1177, 4
    %v1198 = vadd.f32 %v153, %v1183
    %v1199 = vadd.f32 %v156, %v1184
    %v1200 = vadd.f32 %v161, %v1185
    %v1201 = vadd.f32 %v164, %v1177
    %v1202 = vadd.f32 %v169, %v1186
    %v1203 = vadd.f32 %v172, %v1187
    %v1204 = vadd.f32 %v177, %v1188
    %v1205 = vadd.f32 %v180, %v1189
    %v1206 = vxor.u32 %v1198, 2147483648
    %v1207 = vxor.u32 %v1199, 2147483648
    %v1208 = vxor.u32 %v1200, 2147483648
    %v1209 = vxor.u32 %v1201, 2147483648
    %v1210 = vxor.u32 %v1202, 2147483648
    %v1211 = vxor.u32 %v1203, 2147483648
    %v1212 = vxor.u32 %v1204, 2147483648
    %v1213 = vxor.u32 %v1205, 2147483648
    %v1214 = vmul.f32 %v1206, 1.442695
    %v1215 = vpow.pop %v1214
    %v1216 = vmul.f32 %v1207, 1.442695
    %v1217 = vpow.pop %v1216
    %v1218 = vmul.f32 %v1208, 1.442695
    %v1219 = vpow.pop %v1218
    %v1220 = vmul.f32 %v1209, 1.442695
    %v1221 = vpow.pop %v1220
    %v1222 = vmul.f32 %v1210, 1.442695
    %v1223 = vpow.pop %v1222
    %v1224 = vmul.f32 %v1211, 1.442695
    %v1225 = vpow.pop %v1224
    %v1226 = vmul.f32 %v1212, 1.442695
    %v1227 = vpow.pop %v1226
    %v1228 = vmul.f32 %v1213, 1.442695
    %v1229 = vpow.pop %v1228
    %v1230 = vadd.f32 %v1215, 1.0
    %v1231 = vadd.f32 %v1217, 1.0
    %v1232 = vadd.f32 %v1219, 1.0
    %v1233 = vadd.f32 %v1221, 1.0
    %v1234 = vadd.f32 %v1223, 1.0
    %v1235 = vadd.f32 %v1225, 1.0
    %v1236 = vadd.f32 %v1227, 1.0
    %v1237 = vadd.f32 %v1229, 1.0
    %v1238 = vrcp.pop %v1230
    %v1239 = vmul.f32 1.0, %v1238
    %v1240 = vrcp.pop %v1231
    %v1241 = vmul.f32 1.0, %v1240
    %v1242 = vrcp.pop %v1232
    %v1243 = vmul.f32 1.0, %v1242
    %v1244 = vrcp.pop %v1233
    %v1245 = vmul.f32 1.0, %v1244
    %v1246 = vrcp.pop %v1234
    %v1247 = vmul.f32 1.0, %v1246
    %v1248 = vrcp.pop %v1235
    %v1249 = vmul.f32 1.0, %v1248
    %v1250 = vrcp.pop %v1236
    %v1251 = vmul.f32 1.0, %v1250
    %v1252 = vrcp.pop %v1237
    %v1253 = vmul.f32 1.0, %v1252
    %v1254 = vtanh.pop %v1198
    %v1255 = vtanh.pop %v1199
    %v1256 = vtanh.pop %v1200
    %v1257 = vtanh.pop %v1201
    %v1258 = vtanh.pop %v1202
    %v1259 = vtanh.pop %v1203
    %v1260 = vtanh.pop %v1204
    %v1261 = vtanh.pop %v1205
    %v1270 = vrot.slane %v1042, 7
    %v1271 = vrot.slane %v1043, 7
    %v1272 = vrot.slane %v1044, 7
    %v1273 = vrot.slane %v1045, 7
    %v1274 = vrot.slane %v1046, 7
    %v1275 = vrot.slane %v1047, 7
    %v1276 = vrot.slane %v1048, 7
    %v1277 = vrot.slane %v1049, 7
    %v1286 = vmul.f32 %v1239, %v1270
    %v1287 = vmul.f32 %v1241, %v1271
    %v1288 = vmul.f32 %v1243, %v1272
    %v1289 = vmul.f32 %v1245, %v1273
    %v1290 = vmul.f32 %v1247, %v1274
    %v1291 = vmul.f32 %v1249, %v1275
    %v1292 = vmul.f32 %v1251, %v1276
    %v1293 = vmul.f32 %v1253, %v1277
    %1302 = vrot.lane.b32.xlu0 %v1254, 64
    %v1303 = vpop.permute.xlu0 %1302
    %1304 = vrot.lane.b32.xlu0 %v1255, 64
    %v1305 = vpop.permute.xlu0 %1304
    %1306 = vrot.lane.b32.xlu0 %v1256, 64
    %v1307 = vpop.permute.xlu0 %1306
    %1308 = vrot.lane.b32.xlu0 %v1257, 64
    %v1309 = vpop.permute.xlu0 %1308
    %1310 = vrot.lane.b32.xlu0 %v1258, 64
    %v1311 = vpop.permute.xlu0 %1310
    %1312 = vrot.lane.b32.xlu0 %v1259, 64
    %v1313 = vpop.permute.xlu0 %1312
    %1314 = vrot.lane.b32.xlu0 %v1260, 64
    %v1315 = vpop.permute.xlu0 %1314
    %1316 = vrot.lane.b32.xlu0 %v1261, 64
    %v1317 = vpop.permute.xlu0 %1316
    %v1326 = vmul.f32 %v1239, %v1303
    %v1327 = vmul.f32 %v1241, %v1305
    %v1328 = vmul.f32 %v1243, %v1307
    %v1329 = vmul.f32 %v1245, %v1309
    %v1330 = vmul.f32 %v1247, %v1311
    %v1331 = vmul.f32 %v1249, %v1313
    %v1332 = vmul.f32 %v1251, %v1315
    %v1333 = vmul.f32 %v1253, %v1317
    %1342 = vrot.lane.b32.xlu0 %v1326, 32
    %v1343 = vpop.permute.xlu0 %1342
    %1344 = vrot.lane.b32.xlu0 %v1327, 32
    %v1345 = vpop.permute.xlu0 %1344
    %1346 = vrot.lane.b32.xlu0 %v1328, 32
    %v1347 = vpop.permute.xlu0 %1346
    %1348 = vrot.lane.b32.xlu0 %v1329, 32
    %v1349 = vpop.permute.xlu0 %1348
    %1350 = vrot.lane.b32.xlu0 %v1330, 32
    %v1351 = vpop.permute.xlu0 %1350
    %1352 = vrot.lane.b32.xlu0 %v1331, 32
    %v1353 = vpop.permute.xlu0 %1352
    %1354 = vrot.lane.b32.xlu0 %v1332, 32
    %v1355 = vpop.permute.xlu0 %1354
    %1356 = vrot.lane.b32.xlu0 %v1333, 32
    %v1357 = vpop.permute.xlu0 %1356
    %v1366 = vadd.f32 %v1286, %v1343
    %v1367 = vadd.f32 %v1287, %v1345
    %v1368 = vadd.f32 %v1288, %v1347
    %v1369 = vadd.f32 %v1289, %v1349
    %v1370 = vadd.f32 %v1290, %v1351
    %v1371 = vadd.f32 %v1291, %v1353
    %v1372 = vadd.f32 %v1292, %v1355
    %v1373 = vadd.f32 %v1293, %v1357
    %v1374 = vtanh.pop %v1366
    %v1375 = vtanh.pop %v1367
    %v1376 = vtanh.pop %v1368
    %v1377 = vtanh.pop %v1369
    %v1378 = vtanh.pop %v1370
    %v1379 = vtanh.pop %v1371
    %v1380 = vtanh.pop %v1372
    %v1381 = vtanh.pop %v1373
    %1390 = vrot.lane.b32.xlu0 %v1374, 64
    %v1391 = vpop.permute.xlu0 %1390
    %1392 = vrot.lane.b32.xlu0 %v1375, 64
    %v1393 = vpop.permute.xlu0 %1392
    %1394 = vrot.lane.b32.xlu0 %v1376, 64
    %v1395 = vpop.permute.xlu0 %1394
    %1396 = vrot.lane.b32.xlu0 %v1377, 64
    %v1397 = vpop.permute.xlu0 %1396
    %1398 = vrot.lane.b32.xlu0 %v1378, 64
    %v1399 = vpop.permute.xlu0 %1398
    %1400 = vrot.lane.b32.xlu0 %v1379, 64
    %v1401 = vpop.permute.xlu0 %1400
    %1402 = vrot.lane.b32.xlu0 %v1380, 64
    %v1403 = vpop.permute.xlu0 %1402
    %1404 = vrot.lane.b32.xlu0 %v1381, 64
    %v1405 = vpop.permute.xlu0 %1404
    %v1414 = vmul.f32 %v1239, %v1391
    %v1415 = vmul.f32 %v1241, %v1393
    %v1416 = vmul.f32 %v1243, %v1395
    %v1417 = vmul.f32 %v1245, %v1397
    %v1418 = vmul.f32 %v1247, %v1399
    %v1419 = vmul.f32 %v1249, %v1401
    %v1420 = vmul.f32 %v1251, %v1403
    %v1421 = vmul.f32 %v1253, %v1405
    %v1422 = vpack.c.bf16 %v1414, %v1414
    %v1423 = vpack.c.bf16 %v1415, %v1415
    %v1424 = vpack.c.bf16 %v1416, %v1416
    %v1425 = vpack.c.bf16 %v1417, %v1417
    %v1426 = vpack.c.bf16 %v1418, %v1418
    %v1427 = vpack.c.bf16 %v1419, %v1419
    %v1428 = vpack.c.bf16 %v1420, %v1420
    %v1429 = vpack.c.bf16 %v1421, %v1421
    %v1438 = vunpack.c.l.b16 %v1422
    %v1439 = vunpack.c.l.b16 %v1423
    %v1440 = vunpack.c.l.b16 %v1424
    %v1441 = vunpack.c.l.b16 %v1425
    %v1442 = vunpack.c.l.b16 %v1426
    %v1443 = vunpack.c.l.b16 %v1427
    %v1444 = vunpack.c.l.b16 %v1428
    %v1445 = vunpack.c.l.b16 %v1429
    %v1446 = vrot.slane %v1438, 3
    %v1447 = vrot.slane %v1439, 2
    %v1448 = vsel %vm468, %v1447, %v1446
    %v1449 = vrot.slane %v1440, 1
    %v1450 = vsel %vm471, %v1449, %v1448
    %v1451 = vsel %vm474, %v1441, %v1450
    %v1452 = vrot.slane %v1442, 7
    %v1453 = vsel %vm477, %v1452, %v1451
    %v1454 = vrot.slane %v1443, 6
    %v1455 = vsel %vm480, %v1454, %v1453
    %v1456 = vrot.slane %v1444, 5
    %v1457 = vsel %vm483, %v1456, %v1455
    %v1458 = vrot.slane %v1445, 4
    %v1459 = vsel %vm486, %v1458, %v1457
    %v1460 = vpack.c.b16 %v1459, %v1459
    %1461 = vrot.lane.b32.xlu0 %v1460, 32
    %v1462 = vpop.permute.xlu0 %1461
    %v1464 = vsel %vm183, %v1462, 0
    %1466 = vmatprep.subr.bf16.mxu0 0
    %1467 = vmatpush1.bf16.msra.mxu0 %v50
    %1468 = vmatprep.subr.bf16.mxu0 0
    %1469 = vmatpush1.bf16.msra.mxu0 %v51
    %1470 = vmatprep.subr.bf16.mxu0 0
    %1471 = vmatpush1.bf16.msra.mxu0 0
    %1472 = vmatprep.subr.bf16.mxu0 0
    %1473 = vmatpush1.bf16.msra.mxu0 0
    %1474 = vmatprep.subr.bf16.mxu0 0
    %1475 = vmatpush1.bf16.msra.mxu0 0
    %1476 = vmatprep.subr.bf16.mxu0 0
    %1477 = vmatpush1.bf16.msra.mxu0 0
    %1478 = vmatprep.subr.bf16.mxu0 0
    %1479 = vmatpush1.bf16.msra.mxu0 0
    %1480 = vmatprep.subr.bf16.mxu0 0
    %1481 = vmatpush1.bf16.msra.mxu0 0
    %1482 = vmatprep.subr.bf16.mxu0 0
    %1483 = vmatpush1.bf16.msra.mxu0 0
    %1484 = vmatprep.subr.bf16.mxu0 0
    %1485 = vmatpush1.bf16.msra.mxu0 0
    %1486 = vmatprep.subr.bf16.mxu0 0
    %1487 = vmatpush1.bf16.msra.mxu0 0
    %1488 = vmatprep.subr.bf16.mxu0 0
    %1489 = vmatpush1.bf16.msra.mxu0 0
    %1490 = vmatprep.subr.bf16.mxu0 0
    %1491 = vmatpush1.bf16.msra.mxu0 0
    %1492 = vmatprep.subr.bf16.mxu0 0
    %1493 = vmatpush1.bf16.msra.mxu0 0
    %1494 = vmatprep.subr.bf16.mxu0 0
    %1495 = vmatpush1.bf16.msra.mxu0 0
    %1496 = vmatprep.subr.bf16.mxu0 0
    %1497 = vmatpush1.bf16.msra.mxu0 0
    %1498 = vmatprep.mubr.bf16.mxu0 0
    %1499 = vmatmul.mubr.bf16.gmra.mrb[0].mxu0 %v1464
    %v1500 = vpop.f32.mrb[0].mxu0
    %v1501 = vadd.f32 0.0, %v1500
    %v1502 = vpop.f32.mrb[0].mxu0
    %v1503 = vpop.f32.mrb[0].mxu0
    %v1504 = vpop.f32.mrb[0].mxu0
    %1505 = vdwg.mxu0
    %v1507 = vrot.slane %v1501, 4
    %v1508 = vrot.slane %v1501, 5
    %v1509 = vrot.slane %v1501, 6
    %v1510 = vrot.slane %v1501, 7
    %v1511 = vrot.slane %v1501, 1
    %v1512 = vrot.slane %v1501, 2
    %v1513 = vrot.slane %v1501, 3
    %v1522 = vadd.f32 %v153, %v1507
    %v1523 = vadd.f32 %v156, %v1508
    %v1524 = vadd.f32 %v161, %v1509
    %v1525 = vadd.f32 %v164, %v1510
    %v1526 = vadd.f32 %v169, %v1501
    %v1527 = vadd.f32 %v172, %v1511
    %v1528 = vadd.f32 %v177, %v1512
    %v1529 = vadd.f32 %v180, %v1513
    %v1530 = vxor.u32 %v1522, 2147483648
    %v1531 = vxor.u32 %v1523, 2147483648
    %v1532 = vxor.u32 %v1524, 2147483648
    %v1533 = vxor.u32 %v1525, 2147483648
    %v1534 = vxor.u32 %v1526, 2147483648
    %v1535 = vxor.u32 %v1527, 2147483648
    %v1536 = vxor.u32 %v1528, 2147483648
    %v1537 = vxor.u32 %v1529, 2147483648
    %v1538 = vmul.f32 %v1530, 1.442695
    %v1539 = vpow.pop %v1538
    %v1540 = vmul.f32 %v1531, 1.442695
    %v1541 = vpow.pop %v1540
    %v1542 = vmul.f32 %v1532, 1.442695
    %v1543 = vpow.pop %v1542
    %v1544 = vmul.f32 %v1533, 1.442695
    %v1545 = vpow.pop %v1544
    %v1546 = vmul.f32 %v1534, 1.442695
    %v1547 = vpow.pop %v1546
    %v1548 = vmul.f32 %v1535, 1.442695
    %v1549 = vpow.pop %v1548
    %v1550 = vmul.f32 %v1536, 1.442695
    %v1551 = vpow.pop %v1550
    %v1552 = vmul.f32 %v1537, 1.442695
    %v1553 = vpow.pop %v1552
    %v1554 = vadd.f32 %v1539, 1.0
    %v1555 = vadd.f32 %v1541, 1.0
    %v1556 = vadd.f32 %v1543, 1.0
    %v1557 = vadd.f32 %v1545, 1.0
    %v1558 = vadd.f32 %v1547, 1.0
    %v1559 = vadd.f32 %v1549, 1.0
    %v1560 = vadd.f32 %v1551, 1.0
    %v1561 = vadd.f32 %v1553, 1.0
    %v1562 = vrcp.pop %v1554
    %v1563 = vmul.f32 1.0, %v1562
    %v1564 = vrcp.pop %v1555
    %v1565 = vmul.f32 1.0, %v1564
    %v1566 = vrcp.pop %v1556
    %v1567 = vmul.f32 1.0, %v1566
    %v1568 = vrcp.pop %v1557
    %v1569 = vmul.f32 1.0, %v1568
    %v1570 = vrcp.pop %v1558
    %v1571 = vmul.f32 1.0, %v1570
    %v1572 = vrcp.pop %v1559
    %v1573 = vmul.f32 1.0, %v1572
    %v1574 = vrcp.pop %v1560
    %v1575 = vmul.f32 1.0, %v1574
    %v1576 = vrcp.pop %v1561
    %v1577 = vmul.f32 1.0, %v1576
    %v1578 = vtanh.pop %v1522
    %v1579 = vtanh.pop %v1523
    %v1580 = vtanh.pop %v1524
    %v1581 = vtanh.pop %v1525
    %v1582 = vtanh.pop %v1526
    %v1583 = vtanh.pop %v1527
    %v1584 = vtanh.pop %v1528
    %v1585 = vtanh.pop %v1529
    %v1594 = vrot.slane %v1366, 7
    %v1595 = vrot.slane %v1367, 7
    %v1596 = vrot.slane %v1368, 7
    %v1597 = vrot.slane %v1369, 7
    %v1598 = vrot.slane %v1370, 7
    %v1599 = vrot.slane %v1371, 7
    %v1600 = vrot.slane %v1372, 7
    %v1601 = vrot.slane %v1373, 7
    %v1610 = vmul.f32 %v1563, %v1594
    %v1611 = vmul.f32 %v1565, %v1595
    %v1612 = vmul.f32 %v1567, %v1596
    %v1613 = vmul.f32 %v1569, %v1597
    %v1614 = vmul.f32 %v1571, %v1598
    %v1615 = vmul.f32 %v1573, %v1599
    %v1616 = vmul.f32 %v1575, %v1600
    %v1617 = vmul.f32 %v1577, %v1601
    %1626 = vrot.lane.b32.xlu0 %v1578, 64
    %v1627 = vpop.permute.xlu0 %1626
    %1628 = vrot.lane.b32.xlu0 %v1579, 64
    %v1629 = vpop.permute.xlu0 %1628
    %1630 = vrot.lane.b32.xlu0 %v1580, 64
    %v1631 = vpop.permute.xlu0 %1630
    %1632 = vrot.lane.b32.xlu0 %v1581, 64
    %v1633 = vpop.permute.xlu0 %1632
    %1634 = vrot.lane.b32.xlu0 %v1582, 64
    %v1635 = vpop.permute.xlu0 %1634
    %1636 = vrot.lane.b32.xlu0 %v1583, 64
    %v1637 = vpop.permute.xlu0 %1636
    %1638 = vrot.lane.b32.xlu0 %v1584, 64
    %v1639 = vpop.permute.xlu0 %1638
    %1640 = vrot.lane.b32.xlu0 %v1585, 64
    %v1641 = vpop.permute.xlu0 %1640
    %v1650 = vmul.f32 %v1563, %v1627
    %v1651 = vmul.f32 %v1565, %v1629
    %v1652 = vmul.f32 %v1567, %v1631
    %v1653 = vmul.f32 %v1569, %v1633
    %v1654 = vmul.f32 %v1571, %v1635
    %v1655 = vmul.f32 %v1573, %v1637
    %v1656 = vmul.f32 %v1575, %v1639
    %v1657 = vmul.f32 %v1577, %v1641
    %1666 = vrot.lane.b32.xlu0 %v1650, 32
    %v1667 = vpop.permute.xlu0 %1666
    %1668 = vrot.lane.b32.xlu0 %v1651, 32
    %v1669 = vpop.permute.xlu0 %1668
    %1670 = vrot.lane.b32.xlu0 %v1652, 32
    %v1671 = vpop.permute.xlu0 %1670
    %1672 = vrot.lane.b32.xlu0 %v1653, 32
    %v1673 = vpop.permute.xlu0 %1672
    %1674 = vrot.lane.b32.xlu0 %v1654, 32
    %v1675 = vpop.permute.xlu0 %1674
    %1676 = vrot.lane.b32.xlu0 %v1655, 32
    %v1677 = vpop.permute.xlu0 %1676
    %1678 = vrot.lane.b32.xlu0 %v1656, 32
    %v1679 = vpop.permute.xlu0 %1678
    %1680 = vrot.lane.b32.xlu0 %v1657, 32
    %v1681 = vpop.permute.xlu0 %1680
    %v1690 = vadd.f32 %v1610, %v1667
    %v1691 = vadd.f32 %v1611, %v1669
    %v1692 = vadd.f32 %v1612, %v1671
    %v1693 = vadd.f32 %v1613, %v1673
    %v1694 = vadd.f32 %v1614, %v1675
    %v1695 = vadd.f32 %v1615, %v1677
    %v1696 = vadd.f32 %v1616, %v1679
    %v1697 = vadd.f32 %v1617, %v1681
    %v1698 = vtanh.pop %v1690
    %v1699 = vtanh.pop %v1691
    %v1700 = vtanh.pop %v1692
    %v1701 = vtanh.pop %v1693
    %v1702 = vtanh.pop %v1694
    %v1703 = vtanh.pop %v1695
    %v1704 = vtanh.pop %v1696
    %v1705 = vtanh.pop %v1697
    %1714 = vrot.lane.b32.xlu0 %v1698, 64
    %v1715 = vpop.permute.xlu0 %1714
    %1716 = vrot.lane.b32.xlu0 %v1699, 64
    %v1717 = vpop.permute.xlu0 %1716
    %1718 = vrot.lane.b32.xlu0 %v1700, 64
    %v1719 = vpop.permute.xlu0 %1718
    %1720 = vrot.lane.b32.xlu0 %v1701, 64
    %v1721 = vpop.permute.xlu0 %1720
    %1722 = vrot.lane.b32.xlu0 %v1702, 64
    %v1723 = vpop.permute.xlu0 %1722
    %1724 = vrot.lane.b32.xlu0 %v1703, 64
    %v1725 = vpop.permute.xlu0 %1724
    %1726 = vrot.lane.b32.xlu0 %v1704, 64
    %v1727 = vpop.permute.xlu0 %1726
    %1728 = vrot.lane.b32.xlu0 %v1705, 64
    %v1729 = vpop.permute.xlu0 %1728
    %v1738 = vmul.f32 %v1563, %v1715
    %v1739 = vmul.f32 %v1565, %v1717
    %v1740 = vmul.f32 %v1567, %v1719
    %v1741 = vmul.f32 %v1569, %v1721
    %v1742 = vmul.f32 %v1571, %v1723
    %v1743 = vmul.f32 %v1573, %v1725
    %v1744 = vmul.f32 %v1575, %v1727
    %v1745 = vmul.f32 %v1577, %v1729
    %v1746 = vpack.c.bf16 %v1738, %v1738
    %v1747 = vpack.c.bf16 %v1739, %v1739
    %v1748 = vpack.c.bf16 %v1740, %v1740
    %v1749 = vpack.c.bf16 %v1741, %v1741
    %v1750 = vpack.c.bf16 %v1742, %v1742
    %v1751 = vpack.c.bf16 %v1743, %v1743
    %v1752 = vpack.c.bf16 %v1744, %v1744
    %v1753 = vpack.c.bf16 %v1745, %v1745
    %v1762 = vunpack.c.l.b16 %v1746
    %v1763 = vunpack.c.l.b16 %v1747
    %v1764 = vunpack.c.l.b16 %v1748
    %v1765 = vunpack.c.l.b16 %v1749
    %v1766 = vunpack.c.l.b16 %v1750
    %v1767 = vunpack.c.l.b16 %v1751
    %v1768 = vunpack.c.l.b16 %v1752
    %v1769 = vunpack.c.l.b16 %v1753
    %v1770 = vrot.slane %v1762, 4
    %v1771 = vrot.slane %v1763, 3
    %v1772 = vsel %vm468, %v1771, %v1770
    %v1773 = vrot.slane %v1764, 2
    %v1774 = vsel %vm471, %v1773, %v1772
    %v1775 = vrot.slane %v1765, 1
    %v1776 = vsel %vm474, %v1775, %v1774
    %v1777 = vsel %vm477, %v1766, %v1776
    %v1778 = vrot.slane %v1767, 7
    %v1779 = vsel %vm480, %v1778, %v1777
    %v1780 = vrot.slane %v1768, 6
    %v1781 = vsel %vm483, %v1780, %v1779
    %v1782 = vrot.slane %v1769, 5
    %v1783 = vsel %vm486, %v1782, %v1781
    %v1784 = vpack.c.b16 %v1783, %v1783
    %1785 = vrot.lane.b32.xlu0 %v1784, 32
    %v1786 = vpop.permute.xlu0 %1785
    %v1788 = vsel %vm183, %v1786, 0
    %1790 = vmatprep.subr.bf16.mxu0 0
    %1791 = vmatpush1.bf16.msra.mxu0 %v50
    %1792 = vmatprep.subr.bf16.mxu0 0
    %1793 = vmatpush1.bf16.msra.mxu0 %v51
    %1794 = vmatprep.subr.bf16.mxu0 0
    %1795 = vmatpush1.bf16.msra.mxu0 0
    %1796 = vmatprep.subr.bf16.mxu0 0
    %1797 = vmatpush1.bf16.msra.mxu0 0
    %1798 = vmatprep.subr.bf16.mxu0 0
    %1799 = vmatpush1.bf16.msra.mxu0 0
    %1800 = vmatprep.subr.bf16.mxu0 0
    %1801 = vmatpush1.bf16.msra.mxu0 0
    %1802 = vmatprep.subr.bf16.mxu0 0
    %1803 = vmatpush1.bf16.msra.mxu0 0
    %1804 = vmatprep.subr.bf16.mxu0 0
    %1805 = vmatpush1.bf16.msra.mxu0 0
    %1806 = vmatprep.subr.bf16.mxu0 0
    %1807 = vmatpush1.bf16.msra.mxu0 0
    %1808 = vmatprep.subr.bf16.mxu0 0
    %1809 = vmatpush1.bf16.msra.mxu0 0
    %1810 = vmatprep.subr.bf16.mxu0 0
    %1811 = vmatpush1.bf16.msra.mxu0 0
    %1812 = vmatprep.subr.bf16.mxu0 0
    %1813 = vmatpush1.bf16.msra.mxu0 0
    %1814 = vmatprep.subr.bf16.mxu0 0
    %1815 = vmatpush1.bf16.msra.mxu0 0
    %1816 = vmatprep.subr.bf16.mxu0 0
    %1817 = vmatpush1.bf16.msra.mxu0 0
    %1818 = vmatprep.subr.bf16.mxu0 0
    %1819 = vmatpush1.bf16.msra.mxu0 0
    %1820 = vmatprep.subr.bf16.mxu0 0
    %1821 = vmatpush1.bf16.msra.mxu0 0
    %1822 = vmatprep.mubr.bf16.mxu0 0
    %1823 = vmatmul.mubr.bf16.gmra.mrb[0].mxu0 %v1788
    %v1824 = vpop.f32.mrb[0].mxu0
    %v1825 = vadd.f32 0.0, %v1824
    %v1826 = vpop.f32.mrb[0].mxu0
    %v1827 = vpop.f32.mrb[0].mxu0
    %v1828 = vpop.f32.mrb[0].mxu0
    %1829 = vdwg.mxu0
    %v1831 = vrot.slane %v1825, 3
    %v1832 = vrot.slane %v1825, 4
    %v1833 = vrot.slane %v1825, 5
    %v1834 = vrot.slane %v1825, 6
    %v1835 = vrot.slane %v1825, 7
    %v1836 = vrot.slane %v1825, 1
    %v1837 = vrot.slane %v1825, 2
    %v1846 = vadd.f32 %v153, %v1831
    %v1847 = vadd.f32 %v156, %v1832
    %v1848 = vadd.f32 %v161, %v1833
    %v1849 = vadd.f32 %v164, %v1834
    %v1850 = vadd.f32 %v169, %v1835
    %v1851 = vadd.f32 %v172, %v1825
    %v1852 = vadd.f32 %v177, %v1836
    %v1853 = vadd.f32 %v180, %v1837
    %v1854 = vxor.u32 %v1846, 2147483648
    %v1855 = vxor.u32 %v1847, 2147483648
    %v1856 = vxor.u32 %v1848, 2147483648
    %v1857 = vxor.u32 %v1849, 2147483648
    %v1858 = vxor.u32 %v1850, 2147483648
    %v1859 = vxor.u32 %v1851, 2147483648
    %v1860 = vxor.u32 %v1852, 2147483648
    %v1861 = vxor.u32 %v1853, 2147483648
    %v1862 = vmul.f32 %v1854, 1.442695
    %v1863 = vpow.pop %v1862
    %v1864 = vmul.f32 %v1855, 1.442695
    %v1865 = vpow.pop %v1864
    %v1866 = vmul.f32 %v1856, 1.442695
    %v1867 = vpow.pop %v1866
    %v1868 = vmul.f32 %v1857, 1.442695
    %v1869 = vpow.pop %v1868
    %v1870 = vmul.f32 %v1858, 1.442695
    %v1871 = vpow.pop %v1870
    %v1872 = vmul.f32 %v1859, 1.442695
    %v1873 = vpow.pop %v1872
    %v1874 = vmul.f32 %v1860, 1.442695
    %v1875 = vpow.pop %v1874
    %v1876 = vmul.f32 %v1861, 1.442695
    %v1877 = vpow.pop %v1876
    %v1878 = vadd.f32 %v1863, 1.0
    %v1879 = vadd.f32 %v1865, 1.0
    %v1880 = vadd.f32 %v1867, 1.0
    %v1881 = vadd.f32 %v1869, 1.0
    %v1882 = vadd.f32 %v1871, 1.0
    %v1883 = vadd.f32 %v1873, 1.0
    %v1884 = vadd.f32 %v1875, 1.0
    %v1885 = vadd.f32 %v1877, 1.0
    %v1886 = vrcp.pop %v1878
    %v1887 = vmul.f32 1.0, %v1886
    %v1888 = vrcp.pop %v1879
    %v1889 = vmul.f32 1.0, %v1888
    %v1890 = vrcp.pop %v1880
    %v1891 = vmul.f32 1.0, %v1890
    %v1892 = vrcp.pop %v1881
    %v1893 = vmul.f32 1.0, %v1892
    %v1894 = vrcp.pop %v1882
    %v1895 = vmul.f32 1.0, %v1894
    %v1896 = vrcp.pop %v1883
    %v1897 = vmul.f32 1.0, %v1896
    %v1898 = vrcp.pop %v1884
    %v1899 = vmul.f32 1.0, %v1898
    %v1900 = vrcp.pop %v1885
    %v1901 = vmul.f32 1.0, %v1900
    %v1902 = vtanh.pop %v1846
    %v1903 = vtanh.pop %v1847
    %v1904 = vtanh.pop %v1848
    %v1905 = vtanh.pop %v1849
    %v1906 = vtanh.pop %v1850
    %v1907 = vtanh.pop %v1851
    %v1908 = vtanh.pop %v1852
    %v1909 = vtanh.pop %v1853
    %v1918 = vrot.slane %v1690, 7
    %v1919 = vrot.slane %v1691, 7
    %v1920 = vrot.slane %v1692, 7
    %v1921 = vrot.slane %v1693, 7
    %v1922 = vrot.slane %v1694, 7
    %v1923 = vrot.slane %v1695, 7
    %v1924 = vrot.slane %v1696, 7
    %v1925 = vrot.slane %v1697, 7
    %v1934 = vmul.f32 %v1887, %v1918
    %v1935 = vmul.f32 %v1889, %v1919
    %v1936 = vmul.f32 %v1891, %v1920
    %v1937 = vmul.f32 %v1893, %v1921
    %v1938 = vmul.f32 %v1895, %v1922
    %v1939 = vmul.f32 %v1897, %v1923
    %v1940 = vmul.f32 %v1899, %v1924
    %v1941 = vmul.f32 %v1901, %v1925
    %1950 = vrot.lane.b32.xlu0 %v1902, 64
    %v1951 = vpop.permute.xlu0 %1950
    %1952 = vrot.lane.b32.xlu0 %v1903, 64
    %v1953 = vpop.permute.xlu0 %1952
    %1954 = vrot.lane.b32.xlu0 %v1904, 64
    %v1955 = vpop.permute.xlu0 %1954
    %1956 = vrot.lane.b32.xlu0 %v1905, 64
    %v1957 = vpop.permute.xlu0 %1956
    %1958 = vrot.lane.b32.xlu0 %v1906, 64
    %v1959 = vpop.permute.xlu0 %1958
    %1960 = vrot.lane.b32.xlu0 %v1907, 64
    %v1961 = vpop.permute.xlu0 %1960
    %1962 = vrot.lane.b32.xlu0 %v1908, 64
    %v1963 = vpop.permute.xlu0 %1962
    %1964 = vrot.lane.b32.xlu0 %v1909, 64
    %v1965 = vpop.permute.xlu0 %1964
    %v1974 = vmul.f32 %v1887, %v1951
    %v1975 = vmul.f32 %v1889, %v1953
    %v1976 = vmul.f32 %v1891, %v1955
    %v1977 = vmul.f32 %v1893, %v1957
    %v1978 = vmul.f32 %v1895, %v1959
    %v1979 = vmul.f32 %v1897, %v1961
    %v1980 = vmul.f32 %v1899, %v1963
    %v1981 = vmul.f32 %v1901, %v1965
    %1990 = vrot.lane.b32.xlu0 %v1974, 32
    %v1991 = vpop.permute.xlu0 %1990
    %1992 = vrot.lane.b32.xlu0 %v1975, 32
    %v1993 = vpop.permute.xlu0 %1992
    %1994 = vrot.lane.b32.xlu0 %v1976, 32
    %v1995 = vpop.permute.xlu0 %1994
    %1996 = vrot.lane.b32.xlu0 %v1977, 32
    %v1997 = vpop.permute.xlu0 %1996
    %1998 = vrot.lane.b32.xlu0 %v1978, 32
    %v1999 = vpop.permute.xlu0 %1998
    %2000 = vrot.lane.b32.xlu0 %v1979, 32
    %v2001 = vpop.permute.xlu0 %2000
    %2002 = vrot.lane.b32.xlu0 %v1980, 32
    %v2003 = vpop.permute.xlu0 %2002
    %2004 = vrot.lane.b32.xlu0 %v1981, 32
    %v2005 = vpop.permute.xlu0 %2004
    %v2014 = vadd.f32 %v1934, %v1991
    %v2015 = vadd.f32 %v1935, %v1993
    %v2016 = vadd.f32 %v1936, %v1995
    %v2017 = vadd.f32 %v1937, %v1997
    %v2018 = vadd.f32 %v1938, %v1999
    %v2019 = vadd.f32 %v1939, %v2001
    %v2020 = vadd.f32 %v1940, %v2003
    %v2021 = vadd.f32 %v1941, %v2005
    %v2022 = vtanh.pop %v2014
    %v2023 = vtanh.pop %v2015
    %v2024 = vtanh.pop %v2016
    %v2025 = vtanh.pop %v2017
    %v2026 = vtanh.pop %v2018
    %v2027 = vtanh.pop %v2019
    %v2028 = vtanh.pop %v2020
    %v2029 = vtanh.pop %v2021
    %2038 = vrot.lane.b32.xlu0 %v2022, 64
    %v2039 = vpop.permute.xlu0 %2038
    %2040 = vrot.lane.b32.xlu0 %v2023, 64
    %v2041 = vpop.permute.xlu0 %2040
    %2042 = vrot.lane.b32.xlu0 %v2024, 64
    %v2043 = vpop.permute.xlu0 %2042
    %2044 = vrot.lane.b32.xlu0 %v2025, 64
    %v2045 = vpop.permute.xlu0 %2044
    %2046 = vrot.lane.b32.xlu0 %v2026, 64
    %v2047 = vpop.permute.xlu0 %2046
    %2048 = vrot.lane.b32.xlu0 %v2027, 64
    %v2049 = vpop.permute.xlu0 %2048
    %2050 = vrot.lane.b32.xlu0 %v2028, 64
    %v2051 = vpop.permute.xlu0 %2050
    %2052 = vrot.lane.b32.xlu0 %v2029, 64
    %v2053 = vpop.permute.xlu0 %2052
    %v2062 = vmul.f32 %v1887, %v2039
    %v2063 = vmul.f32 %v1889, %v2041
    %v2064 = vmul.f32 %v1891, %v2043
    %v2065 = vmul.f32 %v1893, %v2045
    %v2066 = vmul.f32 %v1895, %v2047
    %v2067 = vmul.f32 %v1897, %v2049
    %v2068 = vmul.f32 %v1899, %v2051
    %v2069 = vmul.f32 %v1901, %v2053
    %v2070 = vpack.c.bf16 %v2062, %v2062
    %v2071 = vpack.c.bf16 %v2063, %v2063
    %v2072 = vpack.c.bf16 %v2064, %v2064
    %v2073 = vpack.c.bf16 %v2065, %v2065
    %v2074 = vpack.c.bf16 %v2066, %v2066
    %v2075 = vpack.c.bf16 %v2067, %v2067
    %v2076 = vpack.c.bf16 %v2068, %v2068
    %v2077 = vpack.c.bf16 %v2069, %v2069
    %v2086 = vunpack.c.l.b16 %v2070
    %v2087 = vunpack.c.l.b16 %v2071
    %v2088 = vunpack.c.l.b16 %v2072
    %v2089 = vunpack.c.l.b16 %v2073
    %v2090 = vunpack.c.l.b16 %v2074
    %v2091 = vunpack.c.l.b16 %v2075
    %v2092 = vunpack.c.l.b16 %v2076
    %v2093 = vunpack.c.l.b16 %v2077
    %v2094 = vrot.slane %v2086, 5
    %v2095 = vrot.slane %v2087, 4
    %v2096 = vsel %vm468, %v2095, %v2094
    %v2097 = vrot.slane %v2088, 3
    %v2098 = vsel %vm471, %v2097, %v2096
    %v2099 = vrot.slane %v2089, 2
    %v2100 = vsel %vm474, %v2099, %v2098
    %v2101 = vrot.slane %v2090, 1
    %v2102 = vsel %vm477, %v2101, %v2100
    %v2103 = vsel %vm480, %v2091, %v2102
    %v2104 = vrot.slane %v2092, 7
    %v2105 = vsel %vm483, %v2104, %v2103
    %v2106 = vrot.slane %v2093, 6
    %v2107 = vsel %vm486, %v2106, %v2105
    %v2108 = vpack.c.b16 %v2107, %v2107
    %2109 = vrot.lane.b32.xlu0 %v2108, 32
    %v2110 = vpop.permute.xlu0 %2109
    %v2112 = vsel %vm183, %v2110, 0
    %2114 = vmatprep.subr.bf16.mxu0 0
    %2115 = vmatpush1.bf16.msra.mxu0 %v50
    %2116 = vmatprep.subr.bf16.mxu0 0
    %2117 = vmatpush1.bf16.msra.mxu0 %v51
    %2118 = vmatprep.subr.bf16.mxu0 0
    %2119 = vmatpush1.bf16.msra.mxu0 0
    %2120 = vmatprep.subr.bf16.mxu0 0
    %2121 = vmatpush1.bf16.msra.mxu0 0
    %2122 = vmatprep.subr.bf16.mxu0 0
    %2123 = vmatpush1.bf16.msra.mxu0 0
    %2124 = vmatprep.subr.bf16.mxu0 0
    %2125 = vmatpush1.bf16.msra.mxu0 0
    %2126 = vmatprep.subr.bf16.mxu0 0
    %2127 = vmatpush1.bf16.msra.mxu0 0
    %2128 = vmatprep.subr.bf16.mxu0 0
    %2129 = vmatpush1.bf16.msra.mxu0 0
    %2130 = vmatprep.subr.bf16.mxu0 0
    %2131 = vmatpush1.bf16.msra.mxu0 0
    %2132 = vmatprep.subr.bf16.mxu0 0
    %2133 = vmatpush1.bf16.msra.mxu0 0
    %2134 = vmatprep.subr.bf16.mxu0 0
    %2135 = vmatpush1.bf16.msra.mxu0 0
    %2136 = vmatprep.subr.bf16.mxu0 0
    %2137 = vmatpush1.bf16.msra.mxu0 0
    %2138 = vmatprep.subr.bf16.mxu0 0
    %2139 = vmatpush1.bf16.msra.mxu0 0
    %2140 = vmatprep.subr.bf16.mxu0 0
    %2141 = vmatpush1.bf16.msra.mxu0 0
    %2142 = vmatprep.subr.bf16.mxu0 0
    %2143 = vmatpush1.bf16.msra.mxu0 0
    %2144 = vmatprep.subr.bf16.mxu0 0
    %2145 = vmatpush1.bf16.msra.mxu0 0
    %2146 = vmatprep.mubr.bf16.mxu0 0
    %2147 = vmatmul.mubr.bf16.gmra.mrb[0].mxu0 %v2112
    %v2148 = vpop.f32.mrb[0].mxu0
    %v2149 = vadd.f32 0.0, %v2148
    %v2150 = vpop.f32.mrb[0].mxu0
    %v2151 = vpop.f32.mrb[0].mxu0
    %v2152 = vpop.f32.mrb[0].mxu0
    %2153 = vdwg.mxu0
    %v2155 = vrot.slane %v2149, 2
    %v2156 = vrot.slane %v2149, 3
    %v2157 = vrot.slane %v2149, 4
    %v2158 = vrot.slane %v2149, 5
    %v2159 = vrot.slane %v2149, 6
    %v2160 = vrot.slane %v2149, 7
    %v2161 = vrot.slane %v2149, 1
    %v2170 = vadd.f32 %v153, %v2155
    %v2171 = vadd.f32 %v156, %v2156
    %v2172 = vadd.f32 %v161, %v2157
    %v2173 = vadd.f32 %v164, %v2158
    %v2174 = vadd.f32 %v169, %v2159
    %v2175 = vadd.f32 %v172, %v2160
    %v2176 = vadd.f32 %v177, %v2149
    %v2177 = vadd.f32 %v180, %v2161
    %v2178 = vxor.u32 %v2170, 2147483648
    %v2179 = vxor.u32 %v2171, 2147483648
    %v2180 = vxor.u32 %v2172, 2147483648
    %v2181 = vxor.u32 %v2173, 2147483648
    %v2182 = vxor.u32 %v2174, 2147483648
    %v2183 = vxor.u32 %v2175, 2147483648
    %v2184 = vxor.u32 %v2176, 2147483648
    %v2185 = vxor.u32 %v2177, 2147483648
    %v2186 = vmul.f32 %v2178, 1.442695
    %v2187 = vpow.pop %v2186
    %v2188 = vmul.f32 %v2179, 1.442695
    %v2189 = vpow.pop %v2188
    %v2190 = vmul.f32 %v2180, 1.442695
    %v2191 = vpow.pop %v2190
    %v2192 = vmul.f32 %v2181, 1.442695
    %v2193 = vpow.pop %v2192
    %v2194 = vmul.f32 %v2182, 1.442695
    %v2195 = vpow.pop %v2194
    %v2196 = vmul.f32 %v2183, 1.442695
    %v2197 = vpow.pop %v2196
    %v2198 = vmul.f32 %v2184, 1.442695
    %v2199 = vpow.pop %v2198
    %v2200 = vmul.f32 %v2185, 1.442695
    %v2201 = vpow.pop %v2200
    %v2202 = vadd.f32 %v2187, 1.0
    %v2203 = vadd.f32 %v2189, 1.0
    %v2204 = vadd.f32 %v2191, 1.0
    %v2205 = vadd.f32 %v2193, 1.0
    %v2206 = vadd.f32 %v2195, 1.0
    %v2207 = vadd.f32 %v2197, 1.0
    %v2208 = vadd.f32 %v2199, 1.0
    %v2209 = vadd.f32 %v2201, 1.0
    %v2210 = vrcp.pop %v2202
    %v2211 = vmul.f32 1.0, %v2210
    %v2212 = vrcp.pop %v2203
    %v2213 = vmul.f32 1.0, %v2212
    %v2214 = vrcp.pop %v2204
    %v2215 = vmul.f32 1.0, %v2214
    %v2216 = vrcp.pop %v2205
    %v2217 = vmul.f32 1.0, %v2216
    %v2218 = vrcp.pop %v2206
    %v2219 = vmul.f32 1.0, %v2218
    %v2220 = vrcp.pop %v2207
    %v2221 = vmul.f32 1.0, %v2220
    %v2222 = vrcp.pop %v2208
    %v2223 = vmul.f32 1.0, %v2222
    %v2224 = vrcp.pop %v2209
    %v2225 = vmul.f32 1.0, %v2224
    %v2226 = vtanh.pop %v2170
    %v2227 = vtanh.pop %v2171
    %v2228 = vtanh.pop %v2172
    %v2229 = vtanh.pop %v2173
    %v2230 = vtanh.pop %v2174
    %v2231 = vtanh.pop %v2175
    %v2232 = vtanh.pop %v2176
    %v2233 = vtanh.pop %v2177
    %v2242 = vrot.slane %v2014, 7
    %v2243 = vrot.slane %v2015, 7
    %v2244 = vrot.slane %v2016, 7
    %v2245 = vrot.slane %v2017, 7
    %v2246 = vrot.slane %v2018, 7
    %v2247 = vrot.slane %v2019, 7
    %v2248 = vrot.slane %v2020, 7
    %v2249 = vrot.slane %v2021, 7
    %v2258 = vmul.f32 %v2211, %v2242
    %v2259 = vmul.f32 %v2213, %v2243
    %v2260 = vmul.f32 %v2215, %v2244
    %v2261 = vmul.f32 %v2217, %v2245
    %v2262 = vmul.f32 %v2219, %v2246
    %v2263 = vmul.f32 %v2221, %v2247
    %v2264 = vmul.f32 %v2223, %v2248
    %v2265 = vmul.f32 %v2225, %v2249
    %2274 = vrot.lane.b32.xlu0 %v2226, 64
    %v2275 = vpop.permute.xlu0 %2274
    %2276 = vrot.lane.b32.xlu0 %v2227, 64
    %v2277 = vpop.permute.xlu0 %2276
    %2278 = vrot.lane.b32.xlu0 %v2228, 64
    %v2279 = vpop.permute.xlu0 %2278
    %2280 = vrot.lane.b32.xlu0 %v2229, 64
    %v2281 = vpop.permute.xlu0 %2280
    %2282 = vrot.lane.b32.xlu0 %v2230, 64
    %v2283 = vpop.permute.xlu0 %2282
    %2284 = vrot.lane.b32.xlu0 %v2231, 64
    %v2285 = vpop.permute.xlu0 %2284
    %2286 = vrot.lane.b32.xlu0 %v2232, 64
    %v2287 = vpop.permute.xlu0 %2286
    %2288 = vrot.lane.b32.xlu0 %v2233, 64
    %v2289 = vpop.permute.xlu0 %2288
    %v2298 = vmul.f32 %v2211, %v2275
    %v2299 = vmul.f32 %v2213, %v2277
    %v2300 = vmul.f32 %v2215, %v2279
    %v2301 = vmul.f32 %v2217, %v2281
    %v2302 = vmul.f32 %v2219, %v2283
    %v2303 = vmul.f32 %v2221, %v2285
    %v2304 = vmul.f32 %v2223, %v2287
    %v2305 = vmul.f32 %v2225, %v2289
    %2314 = vrot.lane.b32.xlu0 %v2298, 32
    %v2315 = vpop.permute.xlu0 %2314
    %2316 = vrot.lane.b32.xlu0 %v2299, 32
    %v2317 = vpop.permute.xlu0 %2316
    %2318 = vrot.lane.b32.xlu0 %v2300, 32
    %v2319 = vpop.permute.xlu0 %2318
    %2320 = vrot.lane.b32.xlu0 %v2301, 32
    %v2321 = vpop.permute.xlu0 %2320
    %2322 = vrot.lane.b32.xlu0 %v2302, 32
    %v2323 = vpop.permute.xlu0 %2322
    %2324 = vrot.lane.b32.xlu0 %v2303, 32
    %v2325 = vpop.permute.xlu0 %2324
    %2326 = vrot.lane.b32.xlu0 %v2304, 32
    %v2327 = vpop.permute.xlu0 %2326
    %2328 = vrot.lane.b32.xlu0 %v2305, 32
    %v2329 = vpop.permute.xlu0 %2328
    %v2338 = vadd.f32 %v2258, %v2315
    %v2339 = vadd.f32 %v2259, %v2317
    %v2340 = vadd.f32 %v2260, %v2319
    %v2341 = vadd.f32 %v2261, %v2321
    %v2342 = vadd.f32 %v2262, %v2323
    %v2343 = vadd.f32 %v2263, %v2325
    %v2344 = vadd.f32 %v2264, %v2327
    %v2345 = vadd.f32 %v2265, %v2329
    %v2346 = vtanh.pop %v2338
    %v2347 = vtanh.pop %v2339
    %v2348 = vtanh.pop %v2340
    %v2349 = vtanh.pop %v2341
    %v2350 = vtanh.pop %v2342
    %v2351 = vtanh.pop %v2343
    %v2352 = vtanh.pop %v2344
    %v2353 = vtanh.pop %v2345
    %2362 = vrot.lane.b32.xlu0 %v2346, 64
    %v2363 = vpop.permute.xlu0 %2362
    %2364 = vrot.lane.b32.xlu0 %v2347, 64
    %v2365 = vpop.permute.xlu0 %2364
    %2366 = vrot.lane.b32.xlu0 %v2348, 64
    %v2367 = vpop.permute.xlu0 %2366
    %2368 = vrot.lane.b32.xlu0 %v2349, 64
    %v2369 = vpop.permute.xlu0 %2368
    %2370 = vrot.lane.b32.xlu0 %v2350, 64
    %v2371 = vpop.permute.xlu0 %2370
    %2372 = vrot.lane.b32.xlu0 %v2351, 64
    %v2373 = vpop.permute.xlu0 %2372
    %2374 = vrot.lane.b32.xlu0 %v2352, 64
    %v2375 = vpop.permute.xlu0 %2374
    %2376 = vrot.lane.b32.xlu0 %v2353, 64
    %v2377 = vpop.permute.xlu0 %2376
    %v2386 = vmul.f32 %v2211, %v2363
    %v2387 = vmul.f32 %v2213, %v2365
    %v2388 = vmul.f32 %v2215, %v2367
    %v2389 = vmul.f32 %v2217, %v2369
    %v2390 = vmul.f32 %v2219, %v2371
    %v2391 = vmul.f32 %v2221, %v2373
    %v2392 = vmul.f32 %v2223, %v2375
    %v2393 = vmul.f32 %v2225, %v2377
    %v2394 = vpack.c.bf16 %v2386, %v2386
    %v2395 = vpack.c.bf16 %v2387, %v2387
    %v2396 = vpack.c.bf16 %v2388, %v2388
    %v2397 = vpack.c.bf16 %v2389, %v2389
    %v2398 = vpack.c.bf16 %v2390, %v2390
    %v2399 = vpack.c.bf16 %v2391, %v2391
    %v2400 = vpack.c.bf16 %v2392, %v2392
    %v2401 = vpack.c.bf16 %v2393, %v2393
    %v2410 = vunpack.c.l.b16 %v2394
    %v2411 = vunpack.c.l.b16 %v2395
    %v2412 = vunpack.c.l.b16 %v2396
    %v2413 = vunpack.c.l.b16 %v2397
    %v2414 = vunpack.c.l.b16 %v2398
    %v2415 = vunpack.c.l.b16 %v2399
    %v2416 = vunpack.c.l.b16 %v2400
    %v2417 = vunpack.c.l.b16 %v2401
    %v2418 = vrot.slane %v2410, 6
    %v2419 = vrot.slane %v2411, 5
    %v2420 = vsel %vm468, %v2419, %v2418
    %v2421 = vrot.slane %v2412, 4
    %v2422 = vsel %vm471, %v2421, %v2420
    %v2423 = vrot.slane %v2413, 3
    %v2424 = vsel %vm474, %v2423, %v2422
    %v2425 = vrot.slane %v2414, 2
    %v2426 = vsel %vm477, %v2425, %v2424
    %v2427 = vrot.slane %v2415, 1
    %v2428 = vsel %vm480, %v2427, %v2426
    %v2429 = vsel %vm483, %v2416, %v2428
    %v2430 = vrot.slane %v2417, 7
    %v2431 = vsel %vm486, %v2430, %v2429
    %v2432 = vpack.c.b16 %v2431, %v2431
    %2433 = vrot.lane.b32.xlu0 %v2432, 32
    %v2434 = vpop.permute.xlu0 %2433
    %v2436 = vsel %vm183, %v2434, 0
    %2438 = vmatprep.subr.bf16.mxu0 0
    %2439 = vmatpush1.bf16.msra.mxu0 %v50
    %2440 = vmatprep.subr.bf16.mxu0 0
    %2441 = vmatpush1.bf16.msra.mxu0 %v51
    %2442 = vmatprep.subr.bf16.mxu0 0
    %2443 = vmatpush1.bf16.msra.mxu0 0
    %2444 = vmatprep.subr.bf16.mxu0 0
    %2445 = vmatpush1.bf16.msra.mxu0 0
    %2446 = vmatprep.subr.bf16.mxu0 0
    %2447 = vmatpush1.bf16.msra.mxu0 0
    %2448 = vmatprep.subr.bf16.mxu0 0
    %2449 = vmatpush1.bf16.msra.mxu0 0
    %2450 = vmatprep.subr.bf16.mxu0 0
    %2451 = vmatpush1.bf16.msra.mxu0 0
    %2452 = vmatprep.subr.bf16.mxu0 0
    %2453 = vmatpush1.bf16.msra.mxu0 0
    %2454 = vmatprep.subr.bf16.mxu0 0
    %2455 = vmatpush1.bf16.msra.mxu0 0
    %2456 = vmatprep.subr.bf16.mxu0 0
    %2457 = vmatpush1.bf16.msra.mxu0 0
    %2458 = vmatprep.subr.bf16.mxu0 0
    %2459 = vmatpush1.bf16.msra.mxu0 0
    %2460 = vmatprep.subr.bf16.mxu0 0
    %2461 = vmatpush1.bf16.msra.mxu0 0
    %2462 = vmatprep.subr.bf16.mxu0 0
    %2463 = vmatpush1.bf16.msra.mxu0 0
    %2464 = vmatprep.subr.bf16.mxu0 0
    %2465 = vmatpush1.bf16.msra.mxu0 0
    %2466 = vmatprep.subr.bf16.mxu0 0
    %2467 = vmatpush1.bf16.msra.mxu0 0
    %2468 = vmatprep.subr.bf16.mxu0 0
    %2469 = vmatpush1.bf16.msra.mxu0 0
    %2470 = vmatprep.mubr.bf16.mxu0 0
    %2471 = vmatmul.mubr.bf16.gmra.mrb[0].mxu0 %v2436
    %v2472 = vpop.f32.mrb[0].mxu0
    %v2473 = vadd.f32 0.0, %v2472
    %v2474 = vpop.f32.mrb[0].mxu0
    %v2475 = vpop.f32.mrb[0].mxu0
    %v2476 = vpop.f32.mrb[0].mxu0
    %2477 = vdwg.mxu0
    %v2479 = vrot.slane %v2473, 1
    %v2480 = vrot.slane %v2473, 2
    %v2481 = vrot.slane %v2473, 3
    %v2482 = vrot.slane %v2473, 4
    %v2483 = vrot.slane %v2473, 5
    %v2484 = vrot.slane %v2473, 6
    %v2485 = vrot.slane %v2473, 7
    %v2494 = vadd.f32 %v153, %v2479
    %v2495 = vadd.f32 %v156, %v2480
    %v2496 = vadd.f32 %v161, %v2481
    %v2497 = vadd.f32 %v164, %v2482
    %v2498 = vadd.f32 %v169, %v2483
    %v2499 = vadd.f32 %v172, %v2484
    %v2500 = vadd.f32 %v177, %v2485
    %v2501 = vadd.f32 %v180, %v2473
    %v2502 = vxor.u32 %v2494, 2147483648
    %v2503 = vxor.u32 %v2495, 2147483648
    %v2504 = vxor.u32 %v2496, 2147483648
    %v2505 = vxor.u32 %v2497, 2147483648
    %v2506 = vxor.u32 %v2498, 2147483648
    %v2507 = vxor.u32 %v2499, 2147483648
    %v2508 = vxor.u32 %v2500, 2147483648
    %v2509 = vxor.u32 %v2501, 2147483648
    %v2510 = vmul.f32 %v2502, 1.442695
    %v2511 = vpow.pop %v2510
    %v2512 = vmul.f32 %v2503, 1.442695
    %v2513 = vpow.pop %v2512
    %v2514 = vmul.f32 %v2504, 1.442695
    %v2515 = vpow.pop %v2514
    %v2516 = vmul.f32 %v2505, 1.442695
    %v2517 = vpow.pop %v2516
    %v2518 = vmul.f32 %v2506, 1.442695
    %v2519 = vpow.pop %v2518
    %v2520 = vmul.f32 %v2507, 1.442695
    %v2521 = vpow.pop %v2520
    %v2522 = vmul.f32 %v2508, 1.442695
    %v2523 = vpow.pop %v2522
    %v2524 = vmul.f32 %v2509, 1.442695
    %v2525 = vpow.pop %v2524
    %v2526 = vadd.f32 %v2511, 1.0
    %v2527 = vadd.f32 %v2513, 1.0
    %v2528 = vadd.f32 %v2515, 1.0
    %v2529 = vadd.f32 %v2517, 1.0
    %v2530 = vadd.f32 %v2519, 1.0
    %v2531 = vadd.f32 %v2521, 1.0
    %v2532 = vadd.f32 %v2523, 1.0
    %v2533 = vadd.f32 %v2525, 1.0
    %v2534 = vrcp.pop %v2526
    %v2535 = vmul.f32 1.0, %v2534
    %v2536 = vrcp.pop %v2527
    %v2537 = vmul.f32 1.0, %v2536
    %v2538 = vrcp.pop %v2528
    %v2539 = vmul.f32 1.0, %v2538
    %v2540 = vrcp.pop %v2529
    %v2541 = vmul.f32 1.0, %v2540
    %v2542 = vrcp.pop %v2530
    %v2543 = vmul.f32 1.0, %v2542
    %v2544 = vrcp.pop %v2531
    %v2545 = vmul.f32 1.0, %v2544
    %v2546 = vrcp.pop %v2532
    %v2547 = vmul.f32 1.0, %v2546
    %v2548 = vrcp.pop %v2533
    %v2549 = vmul.f32 1.0, %v2548
    %v2550 = vtanh.pop %v2494
    %v2551 = vtanh.pop %v2495
    %v2552 = vtanh.pop %v2496
    %v2553 = vtanh.pop %v2497
    %v2554 = vtanh.pop %v2498
    %v2555 = vtanh.pop %v2499
    %v2556 = vtanh.pop %v2500
    %v2557 = vtanh.pop %v2501
    %v2566 = vrot.slane %v2338, 7
    %v2567 = vrot.slane %v2339, 7
    %v2568 = vrot.slane %v2340, 7
    %v2569 = vrot.slane %v2341, 7
    %v2570 = vrot.slane %v2342, 7
    %v2571 = vrot.slane %v2343, 7
    %v2572 = vrot.slane %v2344, 7
    %v2573 = vrot.slane %v2345, 7
    %v2582 = vmul.f32 %v2535, %v2566
    %v2583 = vmul.f32 %v2537, %v2567
    %v2584 = vmul.f32 %v2539, %v2568
    %v2585 = vmul.f32 %v2541, %v2569
    %v2586 = vmul.f32 %v2543, %v2570
    %v2587 = vmul.f32 %v2545, %v2571
    %v2588 = vmul.f32 %v2547, %v2572
    %v2589 = vmul.f32 %v2549, %v2573
    %2598 = vrot.lane.b32.xlu0 %v2550, 64
    %v2599 = vpop.permute.xlu0 %2598
    %2600 = vrot.lane.b32.xlu0 %v2551, 64
    %v2601 = vpop.permute.xlu0 %2600
    %2602 = vrot.lane.b32.xlu0 %v2552, 64
    %v2603 = vpop.permute.xlu0 %2602
    %2604 = vrot.lane.b32.xlu0 %v2553, 64
    %v2605 = vpop.permute.xlu0 %2604
    %2606 = vrot.lane.b32.xlu0 %v2554, 64
    %v2607 = vpop.permute.xlu0 %2606
    %2608 = vrot.lane.b32.xlu0 %v2555, 64
    %v2609 = vpop.permute.xlu0 %2608
    %2610 = vrot.lane.b32.xlu0 %v2556, 64
    %v2611 = vpop.permute.xlu0 %2610
    %2612 = vrot.lane.b32.xlu0 %v2557, 64
    %v2613 = vpop.permute.xlu0 %2612
    %v2622 = vmul.f32 %v2535, %v2599
    %v2623 = vmul.f32 %v2537, %v2601
    %v2624 = vmul.f32 %v2539, %v2603
    %v2625 = vmul.f32 %v2541, %v2605
    %v2626 = vmul.f32 %v2543, %v2607
    %v2627 = vmul.f32 %v2545, %v2609
    %v2628 = vmul.f32 %v2547, %v2611
    %v2629 = vmul.f32 %v2549, %v2613
    %2638 = vrot.lane.b32.xlu0 %v2622, 32
    %v2639 = vpop.permute.xlu0 %2638
    %2640 = vrot.lane.b32.xlu0 %v2623, 32
    %v2641 = vpop.permute.xlu0 %2640
    %2642 = vrot.lane.b32.xlu0 %v2624, 32
    %v2643 = vpop.permute.xlu0 %2642
    %2644 = vrot.lane.b32.xlu0 %v2625, 32
    %v2645 = vpop.permute.xlu0 %2644
    %2646 = vrot.lane.b32.xlu0 %v2626, 32
    %v2647 = vpop.permute.xlu0 %2646
    %2648 = vrot.lane.b32.xlu0 %v2627, 32
    %v2649 = vpop.permute.xlu0 %2648
    %2650 = vrot.lane.b32.xlu0 %v2628, 32
    %v2651 = vpop.permute.xlu0 %2650
    %2652 = vrot.lane.b32.xlu0 %v2629, 32
    %v2653 = vpop.permute.xlu0 %2652
    %v2662 = vadd.f32 %v2582, %v2639
    %v2663 = vadd.f32 %v2583, %v2641
    %v2664 = vadd.f32 %v2584, %v2643
    %v2665 = vadd.f32 %v2585, %v2645
    %v2666 = vadd.f32 %v2586, %v2647
    %v2667 = vadd.f32 %v2587, %v2649
    %v2668 = vadd.f32 %v2588, %v2651
    %v2669 = vadd.f32 %v2589, %v2653
    %v2670 = vtanh.pop %v2662
    %v2671 = vtanh.pop %v2663
    %v2672 = vtanh.pop %v2664
    %v2673 = vtanh.pop %v2665
    %v2674 = vtanh.pop %v2666
    %v2675 = vtanh.pop %v2667
    %v2676 = vtanh.pop %v2668
    %v2677 = vtanh.pop %v2669
    %2686 = vrot.lane.b32.xlu0 %v2670, 64
    %v2687 = vpop.permute.xlu0 %2686
    %2688 = vrot.lane.b32.xlu0 %v2671, 64
    %v2689 = vpop.permute.xlu0 %2688
    %2690 = vrot.lane.b32.xlu0 %v2672, 64
    %v2691 = vpop.permute.xlu0 %2690
    %2692 = vrot.lane.b32.xlu0 %v2673, 64
    %v2693 = vpop.permute.xlu0 %2692
    %2694 = vrot.lane.b32.xlu0 %v2674, 64
    %v2695 = vpop.permute.xlu0 %2694
    %2696 = vrot.lane.b32.xlu0 %v2675, 64
    %v2697 = vpop.permute.xlu0 %2696
    %2698 = vrot.lane.b32.xlu0 %v2676, 64
    %v2699 = vpop.permute.xlu0 %2698
    %2700 = vrot.lane.b32.xlu0 %v2677, 64
    %v2701 = vpop.permute.xlu0 %2700
    %v2710 = vmul.f32 %v2535, %v2687
    %v2711 = vmul.f32 %v2537, %v2689
    %v2712 = vmul.f32 %v2539, %v2691
    %v2713 = vmul.f32 %v2541, %v2693
    %v2714 = vmul.f32 %v2543, %v2695
    %v2715 = vmul.f32 %v2545, %v2697
    %v2716 = vmul.f32 %v2547, %v2699
    %v2717 = vmul.f32 %v2549, %v2701
    %v2718 = vpack.c.bf16 %v2710, %v2710
    %v2719 = vpack.c.bf16 %v2711, %v2711
    %v2720 = vpack.c.bf16 %v2712, %v2712
    %v2721 = vpack.c.bf16 %v2713, %v2713
    %v2722 = vpack.c.bf16 %v2714, %v2714
    %v2723 = vpack.c.bf16 %v2715, %v2715
    %v2724 = vpack.c.bf16 %v2716, %v2716
    %v2725 = vpack.c.bf16 %v2717, %v2717
    %v2726 = vlaneseq
    %v2727 = vshrl.u32 %v2726, 7
    %v2728 = vsub.s32 0, %v2727
    %v2729 = vrot.slane %v59, %v2728
    %v2738 = vunpack.c.l.b16 %v2718
    %v2739 = vunpack.c.l.b16 %v2719
    %v2740 = vunpack.c.l.b16 %v2720
    %v2741 = vunpack.c.l.b16 %v2721
    %v2742 = vunpack.c.l.b16 %v2722
    %v2743 = vunpack.c.l.b16 %v2723
    %v2744 = vunpack.c.l.b16 %v2724
    %v2745 = vunpack.c.l.b16 %v2725
    %v2746 = vrot.slane %v2738, 7
    %v2747 = vrot.slane %v2739, 6
    %v2748 = vsel %vm468, %v2747, %v2746
    %v2749 = vrot.slane %v2740, 5
    %v2750 = vsel %vm471, %v2749, %v2748
    %v2751 = vrot.slane %v2741, 4
    %v2752 = vsel %vm474, %v2751, %v2750
    %v2753 = vrot.slane %v2742, 3
    %v2754 = vsel %vm477, %v2753, %v2752
    %v2755 = vrot.slane %v2743, 2
    %v2756 = vsel %vm480, %v2755, %v2754
    %v2757 = vrot.slane %v2744, 1
    %v2758 = vsel %vm483, %v2757, %v2756
    %v2759 = vsel %vm486, %v2745, %v2758
    %v2760 = vpack.c.b16 %v2759, %v2759
    %2761 = vrot.lane.b32.xlu0 %v2760, 32
    %v2762 = vpop.permute.xlu0 %2761
    %v2764 = vsel %vm183, %v2762, 0
    %2766 = vmatprep.subr.bf16.mxu0 0
    %2767 = vmatpush1.bf16.msra.mxu0 %v57
    %2768 = vmatprep.subr.bf16.mxu0 0
    %2769 = vmatpush1.bf16.msra.mxu0 %v58
    %2770 = vmatprep.subr.bf16.mxu0 0
    %2771 = vmatpush1.bf16.msra.mxu0 0
    %2772 = vmatprep.subr.bf16.mxu0 0
    %2773 = vmatpush1.bf16.msra.mxu0 0
    %2774 = vmatprep.subr.bf16.mxu0 0
    %2775 = vmatpush1.bf16.msra.mxu0 0
    %2776 = vmatprep.subr.bf16.mxu0 0
    %2777 = vmatpush1.bf16.msra.mxu0 0
    %2778 = vmatprep.subr.bf16.mxu0 0
    %2779 = vmatpush1.bf16.msra.mxu0 0
    %2780 = vmatprep.subr.bf16.mxu0 0
    %2781 = vmatpush1.bf16.msra.mxu0 0
    %2782 = vmatprep.subr.bf16.mxu0 0
    %2783 = vmatpush1.bf16.msra.mxu0 0
    %2784 = vmatprep.subr.bf16.mxu0 0
    %2785 = vmatpush1.bf16.msra.mxu0 0
    %2786 = vmatprep.subr.bf16.mxu0 0
    %2787 = vmatpush1.bf16.msra.mxu0 0
    %2788 = vmatprep.subr.bf16.mxu0 0
    %2789 = vmatpush1.bf16.msra.mxu0 0
    %2790 = vmatprep.subr.bf16.mxu0 0
    %2791 = vmatpush1.bf16.msra.mxu0 0
    %2792 = vmatprep.subr.bf16.mxu0 0
    %2793 = vmatpush1.bf16.msra.mxu0 0
    %2794 = vmatprep.subr.bf16.mxu0 0
    %2795 = vmatpush1.bf16.msra.mxu0 0
    %2796 = vmatprep.subr.bf16.mxu0 0
    %2797 = vmatpush1.bf16.msra.mxu0 0
    %2798 = vmatprep.mubr.bf16.mxu0 0
    %2799 = vmatmul.mubr.bf16.gmra.mrb[0].mxu0 %v2764
    %v2800 = vpop.f32.mrb[0].mxu0
    %v2801 = vadd.f32 %v2729, %v2800
    %v2802 = vpop.f32.mrb[0].mxu0
    %v2803 = vpop.f32.mrb[0].mxu0
    %v2804 = vpop.f32.mrb[0].mxu0
    %2805 = vdwg.mxu0
    %v2806 = vmax.f32 %v2801, 0.0
    %v2807 = vpack.c.bf16 %v2806, %v2806
    %v2808 = vlaneseq
    %v2809 = vshrl.u32 %v2808, 7
    %v2810 = vsub.s32 0, %v2809
    %v2811 = vrot.slane %v84, %v2810
    %2812 = vmatprep.subr.bf16.mxu0 0
    %2813 = vmatpush1.bf16.msra.mxu0 %v76
    %2814 = vmatprep.subr.bf16.mxu0 0
    %2815 = vmatpush1.bf16.msra.mxu0 %v77
    %2816 = vmatprep.subr.bf16.mxu0 0
    %2817 = vmatpush1.bf16.msra.mxu0 %v78
    %2818 = vmatprep.subr.bf16.mxu0 0
    %2819 = vmatpush1.bf16.msra.mxu0 %v79
    %2820 = vmatprep.subr.bf16.mxu0 0
    %2821 = vmatpush1.bf16.msra.mxu0 %v80
    %2822 = vmatprep.subr.bf16.mxu0 0
    %2823 = vmatpush1.bf16.msra.mxu0 %v81
    %2824 = vmatprep.subr.bf16.mxu0 0
    %2825 = vmatpush1.bf16.msra.mxu0 %v82
    %2826 = vmatprep.subr.bf16.mxu0 0
    %2827 = vmatpush1.bf16.msra.mxu0 %v83
    %2828 = vmatprep.subr.bf16.mxu0 0
    %2829 = vmatpush1.bf16.msra.mxu0 0
    %2830 = vmatprep.subr.bf16.mxu0 0
    %2831 = vmatpush1.bf16.msra.mxu0 0
    %2832 = vmatprep.subr.bf16.mxu0 0
    %2833 = vmatpush1.bf16.msra.mxu0 0
    %2834 = vmatprep.subr.bf16.mxu0 0
    %2835 = vmatpush1.bf16.msra.mxu0 0
    %2836 = vmatprep.subr.bf16.mxu0 0
    %2837 = vmatpush1.bf16.msra.mxu0 0
    %2838 = vmatprep.subr.bf16.mxu0 0
    %2839 = vmatpush1.bf16.msra.mxu0 0
    %2840 = vmatprep.subr.bf16.mxu0 0
    %2841 = vmatpush1.bf16.msra.mxu0 0
    %2842 = vmatprep.subr.bf16.mxu0 0
    %2843 = vmatpush1.bf16.msra.mxu0 0
    %2844 = vmatprep.mubr.bf16.mxu0 0
    %2845 = vmatmul.mubr.bf16.gmra.mrb[0].mxu0 %v2807
    %v2846 = vpop.f32.mrb[0].mxu0
    %v2847 = vadd.f32 %v2811, %v2846
    %v2848 = vpop.f32.mrb[0].mxu0
    %v2849 = vpop.f32.mrb[0].mxu0
    %v2850 = vpop.f32.mrb[0].mxu0
    %2851 = vdwg.mxu0
    %2852 = vst [vmem:[#allocation7] sm:$0xff] %v2847
    // Predicated region
    $region18: #{tpu_custom_call.1} parent=1 // pred_check
      _
    $region19: #{tpu_custom_call.1} parent=1 // pred_check_branch
      %2854 = sbr.rel (0) target = $region21
    $region20: #{tpu_custom_call.1} parent=1 // pred_region
      %s2856 = ssub.s32 128, 128
      %2857 = vsyncadd [#allocation4], %s2856
      %s2859 = sshll.u32 [#allocation7], 4
      %s2860 = int_to_ptr.vmem [resolvable:$true] %s2859
      %2862 = dma.vmem_to_hbm [thread:$0]  %s2860, 128, %s2, [#allocation4]
    $region21: #{tpu_custom_call.1} parent=1 // pred_fallthru
      _
    // Predicated region
    $region22: #{tpu_custom_call.1} parent=1 // pred_check
      _
    $region23: #{tpu_custom_call.1} parent=1 // pred_check_branch
      %2864 = sbr.rel (0) target = $region25
    $region24: #{tpu_custom_call.1} parent=1 // pred_region
      %2865 = dma.done [#allocation4], 128
    $region25: #{tpu_custom_call.1} parent=1 // pred_fallthru
      _
    %2866 = vsyncpa [#allocation3], 1
    %2867 = vsyncpa [#allocation6], 1
    %2868 = vsyncpa [#allocation4], 1

</llo_original>
